<compile_context>
chip_gen: v6e
topology: v6e:2x2x1
jax: 0.10.0
libtpu: 0.0.40
codegen_flags: <defaults>
</compile_context>

<pallas_src>
import functools

import jax
import jax.numpy as jnp
from jax.experimental import pallas as pl
from jax.experimental.pallas import tpu as pltpu


# ----------------------------------------------------------------------------
# Kernel 1: fused PNAConv layer + BatchNorm + ReLU
# ----------------------------------------------------------------------------
def _pna_layer_kernel(
    # SMEM
    tgt_idx_ref,                       # [E] int32 : target node of each edge
    # VMEM inputs
    x_ref,                             # [N, F_in]
    ea_ref,                            # [E, edge_dim]
    gsrc_ref,                          # [E, N] one-hot gather of source nodes
    gtgt_ref,                          # [E, N] one-hot gather of target nodes
    w_enc_ref, b_enc_ref,              # [edge_dim, F_in], [1, F_in]
    w_pre_t_ref, w_pre_s_ref, w_pre_e_ref, b_pre_ref,   # [F_in, D] x3, [1, D]
    w_post_ref, b_post_ref,            # [T, 13*F_in, F_out], [T, 1, F_out]
    w_lin_ref, b_lin_ref,              # [T*F_out, C], [1, C]
    bn_g_ref, bn_b_ref,                # [1, C], [1, C]
    # output
    o_ref,                             # [N, C]
    # VMEM scratch
    msg_ref, mn_ref, mx_ref,           # [E, D], [N, D], [N, D]
    *, towers, f_in, avg_log):
  f32 = jnp.float32
  n = x_ref.shape[0]
  num_e = ea_ref.shape[0]
  d = towers * f_in

  x = x_ref[...]
  gsrc = gsrc_ref[...]
  gtgt = gtgt_ref[...]

  # --- edge encoder + message pre-net (gathers are one-hot matmuls on MXU) ---
  enc = jnp.dot(ea_ref[...], w_enc_ref[...],
                preferred_element_type=f32) + b_enc_ref[...]           # [E, F_in]
  x_t = jnp.dot(gtgt, x, preferred_element_type=f32)                   # x[tgt]
  x_s = jnp.dot(gsrc, x, preferred_element_type=f32)                   # x[src]
  msg = (jnp.dot(x_t, w_pre_t_ref[...], preferred_element_type=f32)
         + jnp.dot(x_s, w_pre_s_ref[...], preferred_element_type=f32)
         + jnp.dot(enc, w_pre_e_ref[...], preferred_element_type=f32)
         + b_pre_ref[...])                                             # [E, D]

  # --- scatter aggregation: sum, sum-of-squares, degree in ONE MXU push ---
  cat = jnp.concatenate([msg, msg * msg, jnp.ones((num_e, 1), f32)], axis=-1)
  stats = jax.lax.dot_general(gtgt, cat, (((0,), (0,)), ((), ())),
                              preferred_element_type=f32)              # [N, 2D+1]
  s_sum = stats[:, :d]
  s_sq = stats[:, d:2 * d]
  deg = stats[:, 2 * d:2 * d + 1]                                      # [N, 1]
  deg_c = jnp.maximum(deg, 1.0)
  mean = s_sum / deg_c
  var = s_sq / deg_c - mean * mean
  std = jnp.sqrt(jnp.maximum(var, 0.0) + 1e-5)

  # min / max: per-edge scatter loop into VMEM scratch (bounded vreg usage,
  # no [N, E, D] broadcast, scales to larger graphs).
  big = jnp.float32(1e30)
  msg_ref[...] = msg
  mn_ref[...] = jnp.full((n, d), big, f32)
  mx_ref[...] = jnp.full((n, d), -big, f32)

  @pl.loop(0, num_e)
  def _(ei):
    tnode = tgt_idx_ref[ei]
    row = msg_ref[pl.ds(ei, 1), :]
    mn_ref[pl.ds(tnode, 1), :] = jnp.minimum(mn_ref[pl.ds(tnode, 1), :], row)
    mx_ref[pl.ds(tnode, 1), :] = jnp.maximum(mx_ref[pl.ds(tnode, 1), :], row)

  has = deg > 0.5
  mn = jnp.where(has, mn_ref[...], 0.0)                                # empty -> 0
  mx = jnp.where(has, mx_ref[...], 0.0)

  amp = jnp.log(deg_c + 1.0) * (1.0 / avg_log)
  att = avg_log / jnp.log(deg_c + 1.0)

  # --- per-tower post-net (PyG layout: [x | (scaler, aggr, feat)]) + lin ---
  tower_outs = []
  for t in range(towers):
    lo, hi = t * f_in, (t + 1) * f_in
    blocks = [x]
    for scal in (None, amp, att):
      for a in (mean, mn, mx, std):
        blk = a[:, lo:hi]
        blocks.append(blk if scal is None else blk * scal)
    pin = jnp.concatenate(blocks, axis=-1)                             # [N, 13*F_in]
    tower_outs.append(
        jnp.dot(pin, w_post_ref[t], preferred_element_type=f32) + b_post_ref[t])
  post = jnp.concatenate(tower_outs, axis=-1)                          # [N, T*F_out]
  y = jnp.dot(post, w_lin_ref[...], preferred_element_type=f32) + b_lin_ref[...]

  # --- BatchNorm (batch statistics, biased variance) + ReLU ---
  mu = jnp.mean(y, axis=0, keepdims=True)
  var_b = jnp.mean((y - mu) * (y - mu), axis=0, keepdims=True)
  yn = (y - mu) * jax.lax.rsqrt(var_b + 1e-5) * bn_g_ref[...] + bn_b_ref[...]
  o_ref[...] = jnp.maximum(yn, 0.0)


def pna_layer(x, edge_attr, g_src, g_tgt, tgt_idx, p, bn_g, bn_b, towers, avg_log):
  n, f_in = x.shape
  e, edge_dim = edge_attr.shape
  d = towers * f_in
  f_out = p["w_post"].shape[2]
  c_out = p["w_lin"].shape[1]

  w_pre = p["w_pre"]
  w_pre_t = w_pre[:f_in]
  w_pre_s = w_pre[f_in:2 * f_in]
  w_pre_e = w_pre[2 * f_in:]

  spec2 = lambda shp: pl.BlockSpec(shp, lambda i: (0, 0))
  spec3 = lambda shp: pl.BlockSpec(shp, lambda i: (0, 0, 0))

  kernel = functools.partial(_pna_layer_kernel, towers=towers, f_in=f_in,
                             avg_log=float(avg_log))
  return pl.pallas_call(
      kernel,
      grid=(1,),
      in_specs=[
          pl.BlockSpec(memory_space=pltpu.MemorySpace.SMEM),   # tgt_idx
          spec2((n, f_in)),                                    # x
          spec2((e, edge_dim)),                                # edge_attr
          spec2((e, n)),                                       # g_src
          spec2((e, n)),                                       # g_tgt
          spec2((edge_dim, f_in)), spec2((1, f_in)),           # enc
          spec2((f_in, d)), spec2((f_in, d)), spec2((f_in, d)), spec2((1, d)),
          spec3((towers, 13 * f_in, f_out)), spec3((towers, 1, f_out)),
          spec2((towers * f_out, c_out)), spec2((1, c_out)),
          spec2((1, c_out)), spec2((1, c_out)),                # bn gamma/beta
      ],
      out_specs=spec2((n, c_out)),
      out_shape=jax.ShapeDtypeStruct((n, c_out), jnp.float32),
      scratch_shapes=[
          pltpu.VMEM((e, d), jnp.float32),
          pltpu.VMEM((n, d), jnp.float32),
          pltpu.VMEM((n, d), jnp.float32),
      ],
      compiler_params=pltpu.CompilerParams(dimension_semantics=("arbitrary",)),
  )(tgt_idx, x, edge_attr, g_src, g_tgt,
    p["w_enc"], p["b_enc"].reshape(1, -1),
    w_pre_t, w_pre_s, w_pre_e, p["b_pre"].reshape(1, -1),
    p["w_post"], p["b_post"].reshape(towers, 1, f_out),
    p["w_lin"], p["b_lin"].reshape(1, -1),
    bn_g.reshape(1, -1), bn_b.reshape(1, -1))


# ----------------------------------------------------------------------------
# Kernel 2: fused SAGPooling (score + top-1 per graph) + 3-layer MLP
# ----------------------------------------------------------------------------
def _sag_pool_mlp_kernel(b_sag_ref,                    # SMEM [1] f32
                         h_ref, gsrc_ref, gtgt_ref, gm_ref,
                         w_sag_ref,
                         w1_ref, b1_ref, w2_ref, b2_ref, w3_ref, b3_ref,
                         o_ref):
  f32 = jnp.float32
  h = h_ref[...]                                       # [N, C]
  n = h.shape[0]
  g = gm_ref.shape[1]

  # GraphConv(aggr='add') score: lin_rel(sum_{src->n} h_src) + lin_root(h)
  xs = jnp.dot(gsrc_ref[...], h, preferred_element_type=f32)            # h[src] [E, C]
  agg = jax.lax.dot_general(gtgt_ref[...], xs, (((0,), (0,)), ((), ())),
                            preferred_element_type=f32)                 # [N, C]
  hx = jnp.concatenate([agg, h], axis=-1)                               # [N, 2C]
  score = jnp.tanh(jnp.dot(hx, w_sag_ref[...], preferred_element_type=f32)
                   + b_sag_ref[0])                                      # [N, 1]

  # top-1 node per graph (first index of the max), fully vectorized
  gm = gm_ref[...]                                                      # [N, G]
  masked = jnp.where(gm > 0.5, score, jnp.float32(-1e30))               # [N, G]
  mmax = jnp.max(masked, axis=0, keepdims=True)                         # [1, G]
  iota = jax.lax.broadcasted_iota(jnp.int32, (n, g), 0)
  first = jnp.min(jnp.where(masked == mmax, iota, n),
                  axis=0, keepdims=True)                                # [1, G]
  sel = (iota == first).astype(f32)                                     # [N, G] one-hot
  x_pool = jax.lax.dot_general(sel * score, h, (((0,), (0,)), ((), ())),
                               preferred_element_type=f32)              # [G, C]

  # MLP
  z = jnp.maximum(jnp.dot(x_pool, w1_ref[...], preferred_element_type=f32)
                  + b1_ref[...], 0.0)
  z = jnp.maximum(jnp.dot(z, w2_ref[...], preferred_element_type=f32)
                  + b2_ref[...], 0.0)
  o_ref[...] = jnp.dot(z, w3_ref[...], preferred_element_type=f32) + b3_ref[...]


def sag_pool_mlp(h, g_src, g_tgt, gm, params):
  n, c = h.shape
  e = g_src.shape[0]
  g = gm.shape[1]
  p = params["mlp"]
  dout = p["w3"].shape[1]
  # merged GraphConv weight: score = [agg | h] @ [w_rel; w_root] + b_rel
  w_sag = jnp.concatenate([params["w_rel"], params["w_root"]], axis=0)   # [2C, 1]

  spec2 = lambda shp: pl.BlockSpec(shp, lambda i: (0, 0))
  return pl.pallas_call(
      _sag_pool_mlp_kernel,
      grid=(1,),
      in_specs=[
          pl.BlockSpec(memory_space=pltpu.MemorySpace.SMEM),   # b_rel scalar
          spec2((n, c)), spec2((e, n)), spec2((e, n)), spec2((n, g)),
          spec2((2 * c, 1)),
          spec2(p["w1"].shape), spec2((1, p["w1"].shape[1])),
          spec2(p["w2"].shape), spec2((1, p["w2"].shape[1])),
          spec2(p["w3"].shape), spec2((1, dout)),
      ],
      out_specs=spec2((g, dout)),
      out_shape=jax.ShapeDtypeStruct((g, dout), jnp.float32),
      compiler_params=pltpu.CompilerParams(dimension_semantics=("arbitrary",)),
  )(params["b_rel"].reshape(1), h, g_src, g_tgt, gm, w_sag,
    p["w1"], p["b1"].reshape(1, -1), p["w2"], p["b2"].reshape(1, -1),
    p["w3"], p["b3"].reshape(1, -1))


# ----------------------------------------------------------------------------
# Forward
# ----------------------------------------------------------------------------
def pnanet_forward(x, edge_index, edge_attr, batch, params, avg_log, num_graphs):
  n = x.shape[0]
  src, tgt = edge_index[0], edge_index[1]
  node_ids = jnp.arange(n, dtype=jnp.int32)
  g_src = (src[:, None] == node_ids[None, :]).astype(jnp.float32)        # [E, N]
  g_tgt = (tgt[:, None] == node_ids[None, :]).astype(jnp.float32)        # [E, N]
  gm = (batch[:, None] ==
        jnp.arange(num_graphs, dtype=jnp.int32)[None, :]).astype(jnp.float32)  # [N, G]
  tgt_idx = tgt.astype(jnp.int32)

  h = x
  for layer, towers in ((0, 1), (1, 4)):
    p = params["convs"][layer]
    h = pna_layer(h, edge_attr, g_src, g_tgt, tgt_idx, p,
                  params["bn_gamma"][layer], params["bn_beta"][layer],
                  towers, avg_log)

  # TODO(synk): SAGPooling's filter_adj (pooled edge_index/edge_attr) is
  # data-dependent and unused by PNANet.forward, so it is not computed.
  return sag_pool_mlp(h, g_src, g_tgt, gm, params)


# ----------------------------------------------------------------------------
# Deterministic parameter construction
# ----------------------------------------------------------------------------
def _init(key, shape):
  return 0.1 * jax.random.normal(key, shape, dtype=jnp.float32)


def make_pna_params(key, f_in, towers, f_out, edge_dim):
  ks = jax.random.split(key, 8)
  return dict(
      w_enc=_init(ks[0], (edge_dim, f_in)), b_enc=_init(ks[1], (f_in,)),
      w_pre=_init(ks[2], (3 * f_in, towers * f_in)),
      b_pre=_init(ks[3], (towers * f_in,)),
      w_post=_init(ks[4], (towers, 13 * f_in, f_out)),
      b_post=_init(ks[5], (towers, f_out)),
      w_lin=_init(ks[6], (towers * f_out, towers * f_out)),
      b_lin=_init(ks[7], (towers * f_out,)),
  )


if __name__ == "__main__":
  IN_FEA, HIDDEN, OUT_DIM, EDGE_DIM = 16, 32, 4, 8
  NUM_GRAPHS = 2

  key = jax.random.PRNGKey(0)
  k_x, k_e, k_c1, k_c2, k_sag, k_mlp = jax.random.split(key, 6)

  # --- graph data: 2 graphs of 6 nodes each, bidirectional ring edges ------
  N = 12
  batch = jnp.array([0] * 6 + [1] * 6, dtype=jnp.int32)
  edges = []
  for base in (0, 6):
    for i in range(6):
      a, b = base + i, base + (i + 1) % 6
      edges.append((a, b))
      edges.append((b, a))
  edge_index = jnp.array(edges, dtype=jnp.int32).T        # [2, E], row0=src, row1=tgt
  E = edge_index.shape[1]
  x = jax.random.normal(k_x, (N, IN_FEA), dtype=jnp.float32)
  edge_attr = jax.random.normal(k_e, (E, EDGE_DIM), dtype=jnp.float32)

  # degree histogram (the `deg` constructor arg) -> avg_deg['log']
  deg_hist = jnp.array([0.0, 2.0, 4.0, 6.0], dtype=jnp.float32)
  bins = jnp.arange(deg_hist.shape[0], dtype=jnp.float32)
  avg_log = float(jnp.sum(jnp.log(bins + 1.0) * deg_hist) / jnp.sum(deg_hist))

  # --- parameters ----------------------------------------------------------
  k_rel, k_root, k_b = jax.random.split(k_sag, 3)
  k1, k2, k3, k4, k5, k6 = jax.random.split(k_mlp, 6)
  params = dict(
      convs=[
          make_pna_params(k_c1, IN_FEA, 1, HIDDEN, EDGE_DIM),       # layer 0: towers=1
          make_pna_params(k_c2, HIDDEN, 4, HIDDEN // 4, EDGE_DIM),  # layer 1: towers=4
      ],
      bn_gamma=[jnp.ones((HIDDEN,), jnp.float32)] * 2,
      bn_beta=[jnp.zeros((HIDDEN,), jnp.float32)] * 2,
      w_rel=_init(k_rel, (HIDDEN, 1)), b_rel=_init(k_b, (1,)),
      w_root=_init(k_root, (HIDDEN, 1)),
      mlp=dict(
          w1=_init(k1, (HIDDEN, HIDDEN // 2)), b1=_init(k2, (HIDDEN // 2,)),
          w2=_init(k3, (HIDDEN // 2, HIDDEN // 4)), b2=_init(k4, (HIDDEN // 4,)),
          w3=_init(k5, (HIDDEN // 4, OUT_DIM)), b3=_init(k6, (OUT_DIM,)),
      ),
  )

  out = pnanet_forward(x, edge_index, edge_attr, batch, params, avg_log, NUM_GRAPHS)
  out = jax.block_until_ready(out)

  assert out.shape == (NUM_GRAPHS, OUT_DIM), out.shape
  assert bool(jnp.all(jnp.isfinite(out)))
  print("KERNEL_OK")
</pallas_src>

<mosaic_0001>
module attributes {stable_mosaic.version = 11 : i64} {
  func.func @_pna_layer_kernel(%arg0: i32, %arg1: memref<24xi32, #tpu.memory_space<smem>>, %arg2: memref<12x16xf32, #tpu.memory_space<vmem>>, %arg3: memref<24x8xf32, #tpu.memory_space<vmem>>, %arg4: memref<24x12xf32, #tpu.memory_space<vmem>>, %arg5: memref<24x12xf32, #tpu.memory_space<vmem>>, %arg6: memref<8x16xf32, #tpu.memory_space<vmem>>, %arg7: memref<1x16xf32, #tpu.memory_space<vmem>>, %arg8: memref<16x16xf32, #tpu.memory_space<vmem>>, %arg9: memref<16x16xf32, #tpu.memory_space<vmem>>, %arg10: memref<16x16xf32, #tpu.memory_space<vmem>>, %arg11: memref<1x16xf32, #tpu.memory_space<vmem>>, %arg12: memref<1x208x32xf32, #tpu.memory_space<vmem>>, %arg13: memref<1x1x32xf32, #tpu.memory_space<vmem>>, %arg14: memref<32x32xf32, #tpu.memory_space<vmem>>, %arg15: memref<1x32xf32, #tpu.memory_space<vmem>>, %arg16: memref<1x32xf32, #tpu.memory_space<vmem>>, %arg17: memref<1x32xf32, #tpu.memory_space<vmem>>, %arg18: memref<12x32xf32, #tpu.memory_space<vmem>>, %arg19: memref<24x16xf32, #tpu.memory_space<vmem>>, %arg20: memref<12x16xf32, #tpu.memory_space<vmem>>, %arg21: memref<12x16xf32, #tpu.memory_space<vmem>>) attributes {dimension_semantics = [#tpu.dimension_semantics<arbitrary>], iteration_bounds = array<i64: 1>, scalar_prefetch = 0 : i64, scratch_operands = 3 : i64, tpu.core_type = #tpu.core_type<tc>, window_params = [{transform_indices = @transform_0, window_bounds = array<i64: 24>}, {pipeline_mode = #tpu.pipeline_mode<synchronous>, transform_indices = @transform_1, window_bounds = array<i64: 12, 16>}, {pipeline_mode = #tpu.pipeline_mode<synchronous>, transform_indices = @transform_2, window_bounds = array<i64: 24, 8>}, {pipeline_mode = #tpu.pipeline_mode<synchronous>, transform_indices = @transform_3, window_bounds = array<i64: 24, 12>}, {pipeline_mode = #tpu.pipeline_mode<synchronous>, transform_indices = @transform_4, window_bounds = array<i64: 24, 12>}, {pipeline_mode = #tpu.pipeline_mode<synchronous>, transform_indices = @transform_5, window_bounds = array<i64: 8, 16>}, {pipeline_mode = #tpu.pipeline_mode<synchronous>, transform_indices = @transform_6, window_bounds = array<i64: 1, 16>}, {pipeline_mode = #tpu.pipeline_mode<synchronous>, transform_indices = @transform_7, window_bounds = array<i64: 16, 16>}, {pipeline_mode = #tpu.pipeline_mode<synchronous>, transform_indices = @transform_8, window_bounds = array<i64: 16, 16>}, {pipeline_mode = #tpu.pipeline_mode<synchronous>, transform_indices = @transform_9, window_bounds = array<i64: 16, 16>}, {pipeline_mode = #tpu.pipeline_mode<synchronous>, transform_indices = @transform_10, window_bounds = array<i64: 1, 16>}, {pipeline_mode = #tpu.pipeline_mode<synchronous>, transform_indices = @transform_11, window_bounds = array<i64: 1, 208, 32>}, {pipeline_mode = #tpu.pipeline_mode<synchronous>, transform_indices = @transform_12, window_bounds = array<i64: 1, 1, 32>}, {pipeline_mode = #tpu.pipeline_mode<synchronous>, transform_indices = @transform_13, window_bounds = array<i64: 32, 32>}, {pipeline_mode = #tpu.pipeline_mode<synchronous>, transform_indices = @transform_14, window_bounds = array<i64: 1, 32>}, {pipeline_mode = #tpu.pipeline_mode<synchronous>, transform_indices = @transform_15, window_bounds = array<i64: 1, 32>}, {pipeline_mode = #tpu.pipeline_mode<synchronous>, transform_indices = @transform_16, window_bounds = array<i64: 1, 32>}, {pipeline_mode = #tpu.pipeline_mode<synchronous>, transform_indices = @transform_17, window_bounds = array<i64: 12, 32>}]} {
    %c0 = arith.constant 0 : index
    %c0_0 = arith.constant 0 : index
    %0 = vector.load %arg2[%c0, %c0_0] : memref<12x16xf32, #tpu.memory_space<vmem>>, vector<12x16xf32>
    %c0_1 = arith.constant 0 : index
    %c0_2 = arith.constant 0 : index
    %1 = vector.load %arg4[%c0_1, %c0_2] : memref<24x12xf32, #tpu.memory_space<vmem>>, vector<24x12xf32>
    %c0_3 = arith.constant 0 : index
    %c0_4 = arith.constant 0 : index
    %2 = vector.load %arg5[%c0_3, %c0_4] : memref<24x12xf32, #tpu.memory_space<vmem>>, vector<24x12xf32>
    %c0_5 = arith.constant 0 : index
    %c0_6 = arith.constant 0 : index
    %3 = vector.load %arg3[%c0_5, %c0_6] : memref<24x8xf32, #tpu.memory_space<vmem>>, vector<24x8xf32>
    %c0_7 = arith.constant 0 : index
    %c0_8 = arith.constant 0 : index
    %4 = vector.load %arg6[%c0_7, %c0_8] : memref<8x16xf32, #tpu.memory_space<vmem>>, vector<8x16xf32>
    %cst = arith.constant dense<0.000000e+00> : vector<24x16xf32>
    %5 = tpu.matmul %3, %4, %cst {dimension_numbers = #tpu.dot_dimension_numbers<[1], [0], [0], [1], [0, 0, 1, 1], [], []>} : vector<24x8xf32>, vector<8x16xf32>, vector<24x16xf32> -> vector<24x16xf32>
    %c0_9 = arith.constant 0 : index
    %c0_10 = arith.constant 0 : index
    %6 = vector.load %arg7[%c0_9, %c0_10] : memref<1x16xf32, #tpu.memory_space<vmem>>, vector<1x16xf32>
    %7 = vector.broadcast %6 : vector<1x16xf32> to vector<24x16xf32>
    %8 = arith.addf %5, %7 : vector<24x16xf32>
    %cst_11 = arith.constant dense<0.000000e+00> : vector<24x16xf32>
    %9 = tpu.matmul %2, %0, %cst_11 {dimension_numbers = #tpu.dot_dimension_numbers<[1], [0], [0], [1], [0, 0, 1, 1], [], []>} : vector<24x12xf32>, vector<12x16xf32>, vector<24x16xf32> -> vector<24x16xf32>
    %cst_12 = arith.constant dense<0.000000e+00> : vector<24x16xf32>
    %10 = tpu.matmul %1, %0, %cst_12 {dimension_numbers = #tpu.dot_dimension_numbers<[1], [0], [0], [1], [0, 0, 1, 1], [], []>} : vector<24x12xf32>, vector<12x16xf32>, vector<24x16xf32> -> vector<24x16xf32>
    %c0_13 = arith.constant 0 : index
    %c0_14 = arith.constant 0 : index
    %11 = vector.load %arg8[%c0_13, %c0_14] : memref<16x16xf32, #tpu.memory_space<vmem>>, vector<16x16xf32>
    %cst_15 = arith.constant dense<0.000000e+00> : vector<24x16xf32>
    %12 = tpu.matmul %9, %11, %cst_15 {dimension_numbers = #tpu.dot_dimension_numbers<[1], [0], [0], [1], [0, 0, 1, 1], [], []>} : vector<24x16xf32>, vector<16x16xf32>, vector<24x16xf32> -> vector<24x16xf32>
    %c0_16 = arith.constant 0 : index
    %c0_17 = arith.constant 0 : index
    %13 = vector.load %arg9[%c0_16, %c0_17] : memref<16x16xf32, #tpu.memory_space<vmem>>, vector<16x16xf32>
    %cst_18 = arith.constant dense<0.000000e+00> : vector<24x16xf32>
    %14 = tpu.matmul %10, %13, %cst_18 {dimension_numbers = #tpu.dot_dimension_numbers<[1], [0], [0], [1], [0, 0, 1, 1], [], []>} : vector<24x16xf32>, vector<16x16xf32>, vector<24x16xf32> -> vector<24x16xf32>
    %15 = arith.addf %12, %14 : vector<24x16xf32>
    %c0_19 = arith.constant 0 : index
    %c0_20 = arith.constant 0 : index
    %16 = vector.load %arg10[%c0_19, %c0_20] : memref<16x16xf32, #tpu.memory_space<vmem>>, vector<16x16xf32>
    %cst_21 = arith.constant dense<0.000000e+00> : vector<24x16xf32>
    %17 = tpu.matmul %8, %16, %cst_21 {dimension_numbers = #tpu.dot_dimension_numbers<[1], [0], [0], [1], [0, 0, 1, 1], [], []>} : vector<24x16xf32>, vector<16x16xf32>, vector<24x16xf32> -> vector<24x16xf32>
    %18 = arith.addf %15, %17 : vector<24x16xf32>
    %c0_22 = arith.constant 0 : index
    %c0_23 = arith.constant 0 : index
    %19 = vector.load %arg11[%c0_22, %c0_23] : memref<1x16xf32, #tpu.memory_space<vmem>>, vector<1x16xf32>
    %20 = vector.broadcast %19 : vector<1x16xf32> to vector<24x16xf32>
    %21 = arith.addf %18, %20 : vector<24x16xf32>
    %22 = arith.mulf %21, %21 : vector<24x16xf32>
    %cst_24 = arith.constant 1.000000e+00 : f32
    %23 = vector.broadcast %cst_24 : f32 to vector<24x1xf32>
    %24 = tpu.concatenate %21, %22, %23 in 1 : vector<24x16xf32>, vector<24x16xf32>, vector<24x1xf32> -> vector<24x33xf32>
    %cst_25 = arith.constant dense<0.000000e+00> : vector<12x33xf32>
    %25 = tpu.matmul %2, %24, %cst_25 {dimension_numbers = #tpu.dot_dimension_numbers<[0], [0], [1], [1], [0, 1, 1, 1], [], []>} : vector<24x12xf32>, vector<24x33xf32>, vector<12x33xf32> -> vector<12x33xf32>
    %26 = vector.extract_strided_slice %25 {offsets = [0, 0], sizes = [12, 16], strides = [1, 1]} : vector<12x33xf32> to vector<12x16xf32>
    %27 = vector.extract_strided_slice %25 {offsets = [0, 16], sizes = [12, 16], strides = [1, 1]} : vector<12x33xf32> to vector<12x16xf32>
    %28 = vector.extract_strided_slice %25 {offsets = [0, 32], sizes = [12, 1], strides = [1, 1]} : vector<12x33xf32> to vector<12x1xf32>
    %cst_26 = arith.constant 1.000000e+00 : f32
    %29 = vector.broadcast %cst_26 : f32 to vector<12x1xf32>
    %30 = arith.maximumf %28, %29 : vector<12x1xf32>
    %31 = vector.broadcast %30 : vector<12x1xf32> to vector<12x16xf32>
    %32 = arith.divf %26, %31 : vector<12x16xf32>
    %33 = vector.broadcast %30 : vector<12x1xf32> to vector<12x16xf32>
    %34 = arith.divf %27, %33 : vector<12x16xf32>
    %35 = arith.mulf %32, %32 : vector<12x16xf32>
    %36 = arith.subf %34, %35 : vector<12x16xf32>
    %cst_27 = arith.constant 0.000000e+00 : f32
    %37 = vector.broadcast %cst_27 : f32 to vector<12x16xf32>
    %38 = arith.maximumf %36, %37 : vector<12x16xf32>
    %cst_28 = arith.constant 9.99999974E-6 : f32
    %39 = vector.broadcast %cst_28 : f32 to vector<12x16xf32>
    %40 = arith.addf %38, %39 : vector<12x16xf32>
    %41 = math.sqrt %40 : vector<12x16xf32>
    %c0_29 = arith.constant 0 : index
    %c0_30 = arith.constant 0 : index
    %42 = vector.load %arg19[%c0_29, %c0_30] : memref<24x16xf32, #tpu.memory_space<vmem>>, vector<24x16xf32>
    tpu.vector_store %arg19[%c0_29, %c0_30], %21 {strides = array<i32>} : memref<24x16xf32, #tpu.memory_space<vmem>>, vector<24x16xf32>,
    %cst_31 = arith.constant 1.000000e+30 : f32
    %43 = vector.broadcast %cst_31 : f32 to vector<12x16xf32>
    %c0_32 = arith.constant 0 : index
    %c0_33 = arith.constant 0 : index
    %44 = vector.load %arg20[%c0_32, %c0_33] : memref<12x16xf32, #tpu.memory_space<vmem>>, vector<12x16xf32>
    tpu.vector_store %arg20[%c0_32, %c0_33], %43 {strides = array<i32>} : memref<12x16xf32, #tpu.memory_space<vmem>>, vector<12x16xf32>,
    %cst_34 = arith.constant 0.000000e+00 : f32
    %cst_35 = arith.constant 1.000000e+30 : f32
    %45 = arith.subf %cst_34, %cst_35 : f32
    %46 = vector.broadcast %45 : f32 to vector<12x16xf32>
    %c0_36 = arith.constant 0 : index
    %c0_37 = arith.constant 0 : index
    %47 = vector.load %arg21[%c0_36, %c0_37] : memref<12x16xf32, #tpu.memory_space<vmem>>, vector<12x16xf32>
    tpu.vector_store %arg21[%c0_36, %c0_37], %46 {strides = array<i32>} : memref<12x16xf32, #tpu.memory_space<vmem>>, vector<12x16xf32>,
    %c0_i32 = arith.constant 0 : i32
    %c24_i32 = arith.constant 24 : i32
    %48 = arith.addi %c0_i32, %c24_i32 : i32
    %c1_i32 = arith.constant 1 : i32
    scf.for %arg22 = %c0_i32 to %48 step %c1_i32  : i32 {
      %c1_i32_74 = arith.constant 1 : i32
      %129 = arith.muli %arg22, %c1_i32_74 : i32
      %c0_i32_75 = arith.constant 0 : i32
      %130 = arith.addi %c0_i32_75, %129 : i32
      %131 = arith.index_cast %130 : i32 to index
      %132 = memref.load %arg1[%131] : memref<24xi32, #tpu.memory_space<smem>>
      %133 = arith.index_cast %130 : i32 to index
      %c0_76 = arith.constant 0 : index
      %134 = vector.load %arg19[%133, %c0_76] : memref<24x16xf32, #tpu.memory_space<vmem>>, vector<1x16xf32>
      %135 = arith.index_cast %132 : i32 to index
      %c0_77 = arith.constant 0 : index
      %136 = vector.load %arg20[%135, %c0_77] : memref<12x16xf32, #tpu.memory_space<vmem>>, vector<1x16xf32>
      %137 = arith.minimumf %136, %134 : vector<1x16xf32>
      %138 = arith.index_cast %132 : i32 to index
      %c0_78 = arith.constant 0 : index
      %139 = vector.load %arg20[%138, %c0_78] : memref<12x16xf32, #tpu.memory_space<vmem>>, vector<1x16xf32>
      tpu.vector_store %arg20[%138, %c0_78], %137 {strides = array<i32>} : memref<12x16xf32, #tpu.memory_space<vmem>>, vector<1x16xf32>,
      %140 = arith.index_cast %132 : i32 to index
      %c0_79 = arith.constant 0 : index
      %141 = vector.load %arg21[%140, %c0_79] : memref<12x16xf32, #tpu.memory_space<vmem>>, vector<1x16xf32>
      %142 = arith.maximumf %141, %134 : vector<1x16xf32>
      %143 = arith.index_cast %132 : i32 to index
      %c0_80 = arith.constant 0 : index
      %144 = vector.load %arg21[%143, %c0_80] : memref<12x16xf32, #tpu.memory_space<vmem>>, vector<1x16xf32>
      tpu.vector_store %arg21[%143, %c0_80], %142 {strides = array<i32>} : memref<12x16xf32, #tpu.memory_space<vmem>>, vector<1x16xf32>,
    }
    %c24_i32_38 = arith.constant 24 : i32
    %cst_39 = arith.constant 5.000000e-01 : f32
    %49 = vector.broadcast %cst_39 : f32 to vector<12x1xf32>
    %50 = arith.cmpf ogt, %28, %49 : vector<12x1xf32>
    %c0_40 = arith.constant 0 : index
    %c0_41 = arith.constant 0 : index
    %51 = vector.load %arg20[%c0_40, %c0_41] : memref<12x16xf32, #tpu.memory_space<vmem>>, vector<12x16xf32>
    %cst_42 = arith.constant 0.000000e+00 : f32
    %52 = vector.shape_cast %50 : vector<12x1xi1> to vector<12x1xi1>
    %53 = vector.broadcast %52 : vector<12x1xi1> to vector<12x16xi1>
    %54 = vector.broadcast %cst_42 : f32 to vector<12x16xf32>
    %55 = arith.select %53, %51, %54 : vector<12x16xi1>, vector<12x16xf32>
    %c0_43 = arith.constant 0 : index
    %c0_44 = arith.constant 0 : index
    %56 = vector.load %arg21[%c0_43, %c0_44] : memref<12x16xf32, #tpu.memory_space<vmem>>, vector<12x16xf32>
    %cst_45 = arith.constant 0.000000e+00 : f32
    %57 = vector.shape_cast %50 : vector<12x1xi1> to vector<12x1xi1>
    %58 = vector.broadcast %57 : vector<12x1xi1> to vector<12x16xi1>
    %59 = vector.broadcast %cst_45 : f32 to vector<12x16xf32>
    %60 = arith.select %58, %56, %59 : vector<12x16xi1>, vector<12x16xf32>
    %cst_46 = arith.constant 1.000000e+00 : f32
    %61 = vector.broadcast %cst_46 : f32 to vector<12x1xf32>
    %62 = arith.addf %30, %61 : vector<12x1xf32>
    %63 = math.log %62 : vector<12x1xf32>
    %cst_47 = arith.constant 0.851153731 : f32
    %64 = vector.broadcast %cst_47 : f32 to vector<12x1xf32>
    %65 = arith.mulf %63, %64 : vector<12x1xf32>
    %cst_48 = arith.constant 1.000000e+00 : f32
    %66 = vector.broadcast %cst_48 : f32 to vector<12x1xf32>
    %67 = arith.addf %30, %66 : vector<12x1xf32>
    %68 = math.log %67 : vector<12x1xf32>
    %cst_49 = arith.constant 1.17487586 : f32
    %69 = vector.broadcast %cst_49 : f32 to vector<12x1xf32>
    %70 = arith.divf %69, %68 : vector<12x1xf32>
    %71 = vector.broadcast %65 : vector<12x1xf32> to vector<12x16xf32>
    %72 = arith.mulf %32, %71 : vector<12x16xf32>
    %73 = vector.broadcast %65 : vector<12x1xf32> to vector<12x16xf32>
    %74 = arith.mulf %55, %73 : vector<12x16xf32>
    %75 = vector.broadcast %65 : vector<12x1xf32> to vector<12x16xf32>
    %76 = arith.mulf %60, %75 : vector<12x16xf32>
    %77 = vector.broadcast %65 : vector<12x1xf32> to vector<12x16xf32>
    %78 = arith.mulf %41, %77 : vector<12x16xf32>
    %79 = vector.broadcast %70 : vector<12x1xf32> to vector<12x16xf32>
    %80 = arith.mulf %32, %79 : vector<12x16xf32>
    %81 = vector.broadcast %70 : vector<12x1xf32> to vector<12x16xf32>
    %82 = arith.mulf %55, %81 : vector<12x16xf32>
    %83 = vector.broadcast %70 : vector<12x1xf32> to vector<12x16xf32>
    %84 = arith.mulf %60, %83 : vector<12x16xf32>
    %85 = vector.broadcast %70 : vector<12x1xf32> to vector<12x16xf32>
    %86 = arith.mulf %41, %85 : vector<12x16xf32>
    %87 = tpu.concatenate %0, %32, %55, %60, %41, %72, %74, %76, %78, %80, %82, %84, %86 in 1 : vector<12x16xf32>, vector<12x16xf32>, vector<12x16xf32>, vector<12x16xf32>, vector<12x16xf32>, vector<12x16xf32>, vector<12x16xf32>, vector<12x16xf32>, vector<12x16xf32>, vector<12x16xf32>, vector<12x16xf32>, vector<12x16xf32>, vector<12x16xf32> -> vector<12x208xf32>
    %c0_50 = arith.constant 0 : index
    %c0_51 = arith.constant 0 : index
    %c0_52 = arith.constant 0 : index
    %88 = vector.load %arg12[%c0_50, %c0_51, %c0_52] : memref<1x208x32xf32, #tpu.memory_space<vmem>>, vector<1x208x32xf32>
    %89 = vector.shape_cast %88 : vector<1x208x32xf32> to vector<208x32xf32>
    %cst_53 = arith.constant dense<0.000000e+00> : vector<12x32xf32>
    %90 = tpu.matmul %87, %89, %cst_53 {dimension_numbers = #tpu.dot_dimension_numbers<[1], [0], [0], [1], [0, 0, 1, 1], [], []>} : vector<12x208xf32>, vector<208x32xf32>, vector<12x32xf32> -> vector<12x32xf32>
    %c0_54 = arith.constant 0 : index
    %c0_55 = arith.constant 0 : index
    %c0_56 = arith.constant 0 : index
    %91 = vector.load %arg13[%c0_54, %c0_55, %c0_56] : memref<1x1x32xf32, #tpu.memory_space<vmem>>, vector<1x1x32xf32>
    %92 = vector.shape_cast %91 : vector<1x1x32xf32> to vector<1x32xf32>
    %93 = vector.broadcast %92 : vector<1x32xf32> to vector<12x32xf32>
    %94 = arith.addf %90, %93 : vector<12x32xf32>
    %c0_57 = arith.constant 0 : index
    %c0_58 = arith.constant 0 : index
    %95 = vector.load %arg14[%c0_57, %c0_58] : memref<32x32xf32, #tpu.memory_space<vmem>>, vector<32x32xf32>
    %cst_59 = arith.constant dense<0.000000e+00> : vector<12x32xf32>
    %96 = tpu.matmul %94, %95, %cst_59 {dimension_numbers = #tpu.dot_dimension_numbers<[1], [0], [0], [1], [0, 0, 1, 1], [], []>} : vector<12x32xf32>, vector<32x32xf32>, vector<12x32xf32> -> vector<12x32xf32>
    %c0_60 = arith.constant 0 : index
    %c0_61 = arith.constant 0 : index
    %97 = vector.load %arg15[%c0_60, %c0_61] : memref<1x32xf32, #tpu.memory_space<vmem>>, vector<1x32xf32>
    %98 = vector.broadcast %97 : vector<1x32xf32> to vector<12x32xf32>
    %99 = arith.addf %96, %98 : vector<12x32xf32>
    %cst_62 = arith.constant dense<0.000000e+00> : vector<32xf32>
    %100 = vector.multi_reduction <add>, %99, %cst_62 [0] : vector<12x32xf32> to vector<32xf32>
    %101 = vector.shape_cast %100 : vector<32xf32> to vector<1x32xf32>
    %cst_63 = arith.constant 1.200000e+01 : f32
    %102 = vector.broadcast %cst_63 : f32 to vector<1x32xf32>
    %103 = arith.divf %101, %102 : vector<1x32xf32>
    %104 = vector.broadcast %103 : vector<1x32xf32> to vector<12x32xf32>
    %105 = arith.subf %99, %104 : vector<12x32xf32>
    %106 = vector.broadcast %103 : vector<1x32xf32> to vector<12x32xf32>
    %107 = arith.subf %99, %106 : vector<12x32xf32>
    %108 = arith.mulf %105, %107 : vector<12x32xf32>
    %cst_64 = arith.constant dense<0.000000e+00> : vector<32xf32>
    %109 = vector.multi_reduction <add>, %108, %cst_64 [0] : vector<12x32xf32> to vector<32xf32>
    %110 = vector.shape_cast %109 : vector<32xf32> to vector<1x32xf32>
    %cst_65 = arith.constant 1.200000e+01 : f32
    %111 = vector.broadcast %cst_65 : f32 to vector<1x32xf32>
    %112 = arith.divf %110, %111 : vector<1x32xf32>
    %113 = vector.broadcast %103 : vector<1x32xf32> to vector<12x32xf32>
    %114 = arith.subf %99, %113 : vector<12x32xf32>
    %cst_66 = arith.constant 9.99999974E-6 : f32
    %115 = vector.broadcast %cst_66 : f32 to vector<1x32xf32>
    %116 = arith.addf %112, %115 : vector<1x32xf32>
    %117 = math.rsqrt %116 : vector<1x32xf32>
    %118 = vector.broadcast %117 : vector<1x32xf32> to vector<12x32xf32>
    %119 = arith.mulf %114, %118 : vector<12x32xf32>
    %c0_67 = arith.constant 0 : index
    %c0_68 = arith.constant 0 : index
    %120 = vector.load %arg16[%c0_67, %c0_68] : memref<1x32xf32, #tpu.memory_space<vmem>>, vector<1x32xf32>
    %121 = vector.broadcast %120 : vector<1x32xf32> to vector<12x32xf32>
    %122 = arith.mulf %119, %121 : vector<12x32xf32>
    %c0_69 = arith.constant 0 : index
    %c0_70 = arith.constant 0 : index
    %123 = vector.load %arg17[%c0_69, %c0_70] : memref<1x32xf32, #tpu.memory_space<vmem>>, vector<1x32xf32>
    %124 = vector.broadcast %123 : vector<1x32xf32> to vector<12x32xf32>
    %125 = arith.addf %122, %124 : vector<12x32xf32>
    %cst_71 = arith.constant 0.000000e+00 : f32
    %126 = vector.broadcast %cst_71 : f32 to vector<12x32xf32>
    %127 = arith.maximumf %125, %126 : vector<12x32xf32>
    %c0_72 = arith.constant 0 : index
    %c0_73 = arith.constant 0 : index
    %128 = vector.load %arg18[%c0_72, %c0_73] : memref<12x32xf32, #tpu.memory_space<vmem>>, vector<12x32xf32>
    tpu.vector_store %arg18[%c0_72, %c0_73], %127 {strides = array<i32>} : memref<12x32xf32, #tpu.memory_space<vmem>>, vector<12x32xf32>,
    return
  }
  func.func @transform_0(%arg0: i32) -> i32 {
    %c0_i32 = arith.constant 0 : i32
    %c0_i32_0 = arith.constant 0 : i32
    return %c0_i32 : i32
  }
  func.func @transform_1(%arg0: i32) -> (i32, i32) {
    %c0_i32 = arith.constant 0 : i32
    %c0_i32_0 = arith.constant 0 : i32
    %c0_i32_1 = arith.constant 0 : i32
    return %c0_i32, %c0_i32_0 : i32, i32
  }
  func.func @transform_2(%arg0: i32) -> (i32, i32) {
    %c0_i32 = arith.constant 0 : i32
    %c0_i32_0 = arith.constant 0 : i32
    %c0_i32_1 = arith.constant 0 : i32
    return %c0_i32, %c0_i32_0 : i32, i32
  }
  func.func @transform_3(%arg0: i32) -> (i32, i32) {
    %c0_i32 = arith.constant 0 : i32
    %c0_i32_0 = arith.constant 0 : i32
    %c0_i32_1 = arith.constant 0 : i32
    return %c0_i32, %c0_i32_0 : i32, i32
  }
  func.func @transform_4(%arg0: i32) -> (i32, i32) {
    %c0_i32 = arith.constant 0 : i32
    %c0_i32_0 = arith.constant 0 : i32
    %c0_i32_1 = arith.constant 0 : i32
    return %c0_i32, %c0_i32_0 : i32, i32
  }
  func.func @transform_5(%arg0: i32) -> (i32, i32) {
    %c0_i32 = arith.constant 0 : i32
    %c0_i32_0 = arith.constant 0 : i32
    %c0_i32_1 = arith.constant 0 : i32
    return %c0_i32, %c0_i32_0 : i32, i32
  }
  func.func @transform_6(%arg0: i32) -> (i32, i32) {
    %c0_i32 = arith.constant 0 : i32
    %c0_i32_0 = arith.constant 0 : i32
    %c0_i32_1 = arith.constant 0 : i32
    return %c0_i32, %c0_i32_0 : i32, i32
  }
  func.func @transform_7(%arg0: i32) -> (i32, i32) {
    %c0_i32 = arith.constant 0 : i32
    %c0_i32_0 = arith.constant 0 : i32
    %c0_i32_1 = arith.constant 0 : i32
    return %c0_i32, %c0_i32_0 : i32, i32
  }
  func.func @transform_8(%arg0: i32) -> (i32, i32) {
    %c0_i32 = arith.constant 0 : i32
    %c0_i32_0 = arith.constant 0 : i32
    %c0_i32_1 = arith.constant 0 : i32
    return %c0_i32, %c0_i32_0 : i32, i32
  }
  func.func @transform_9(%arg0: i32) -> (i32, i32) {
    %c0_i32 = arith.constant 0 : i32
    %c0_i32_0 = arith.constant 0 : i32
    %c0_i32_1 = arith.constant 0 : i32
    return %c0_i32, %c0_i32_0 : i32, i32
  }
  func.func @transform_10(%arg0: i32) -> (i32, i32) {
    %c0_i32 = arith.constant 0 : i32
    %c0_i32_0 = arith.constant 0 : i32
    %c0_i32_1 = arith.constant 0 : i32
    return %c0_i32, %c0_i32_0 : i32, i32
  }
  func.func @transform_11(%arg0: i32) -> (i32, i32, i32) {
    %c0_i32 = arith.constant 0 : i32
    %c0_i32_0 = arith.constant 0 : i32
    %c0_i32_1 = arith.constant 0 : i32
    %c0_i32_2 = arith.constant 0 : i32
    return %c0_i32, %c0_i32_0, %c0_i32_1 : i32, i32, i32
  }
  func.func @transform_12(%arg0: i32) -> (i32, i32, i32) {
    %c0_i32 = arith.constant 0 : i32
    %c0_i32_0 = arith.constant 0 : i32
    %c0_i32_1 = arith.constant 0 : i32
    %c0_i32_2 = arith.constant 0 : i32
    return %c0_i32, %c0_i32_0, %c0_i32_1 : i32, i32, i32
  }
  func.func @transform_13(%arg0: i32) -> (i32, i32) {
    %c0_i32 = arith.constant 0 : i32
    %c0_i32_0 = arith.constant 0 : i32
    %c0_i32_1 = arith.constant 0 : i32
    return %c0_i32, %c0_i32_0 : i32, i32
  }
  func.func @transform_14(%arg0: i32) -> (i32, i32) {
    %c0_i32 = arith.constant 0 : i32
    %c0_i32_0 = arith.constant 0 : i32
    %c0_i32_1 = arith.constant 0 : i32
    return %c0_i32, %c0_i32_0 : i32, i32
  }
  func.func @transform_15(%arg0: i32) -> (i32, i32) {
    %c0_i32 = arith.constant 0 : i32
    %c0_i32_0 = arith.constant 0 : i32
    %c0_i32_1 = arith.constant 0 : i32
    return %c0_i32, %c0_i32_0 : i32, i32
  }
  func.func @transform_16(%arg0: i32) -> (i32, i32) {
    %c0_i32 = arith.constant 0 : i32
    %c0_i32_0 = arith.constant 0 : i32
    %c0_i32_1 = arith.constant 0 : i32
    return %c0_i32, %c0_i32_0 : i32, i32
  }
  func.func @transform_17(%arg0: i32) -> (i32, i32) {
    %c0_i32 = arith.constant 0 : i32
    %c0_i32_0 = arith.constant 0 : i32
    %c0_i32_1 = arith.constant 0 : i32
    return %c0_i32, %c0_i32_0 : i32, i32
  }
}

</mosaic_0001>

<llo_original>
// kernel: tpu_custom_call.1
$region0: #{tpu_custom_call.1}
  #allocation0 [shape = 'u32[]', space=smem, size = 0x4, offset = 0x4, fixed_abs, tag = 'smem constant byte address 0x4 - core index']
  #allocation1 [shape = 'u32[144,128]{1,0:T(1,128)}', space=vmem, size = 0x12000, scoped, tag = 'internal scratch']
  #allocation2 [shape = 'f32[24,16]{1,0:T(8,128)}', space=vmem, size = 0x3000, scoped, tag = 'scratch operand']
  #allocation3 [shape = 'f32[12,16]{1,0:T(8,128)}', space=vmem, size = 0x2000, scoped, tag = 'scratch operand']
  #allocation4 [shape = 'f32[12,16]{1,0:T(8,128)}', space=vmem, size = 0x2000, scoped, tag = 'scratch operand']
  %s0 = inlined_call_operand.vmem [shape: s32[24], index: 0, kind: input, shape index: {}]
  %s1 = inlined_call_operand.vmem [shape: f32[12,16], index: 1, kind: input, shape index: {}]
  %s2 = inlined_call_operand.vmem [shape: f32[24,8], index: 2, kind: input, shape index: {}]
  %s3 = inlined_call_operand.vmem [shape: f32[24,12], index: 3, kind: input, shape index: {}]
  %s4 = inlined_call_operand.vmem [shape: f32[24,12], index: 4, kind: input, shape index: {}]
  %s5 = inlined_call_operand.vmem [shape: f32[8,16], index: 5, kind: input, shape index: {}]
  %s6 = inlined_call_operand.vmem [shape: f32[1,16], index: 6, kind: input, shape index: {}]
  %s7 = inlined_call_operand.vmem [shape: f32[16,16], index: 7, kind: input, shape index: {}]
  %s8 = inlined_call_operand.vmem [shape: f32[16,16], index: 8, kind: input, shape index: {}]
  %s9 = inlined_call_operand.vmem [shape: f32[16,16], index: 9, kind: input, shape index: {}]
  %s10 = inlined_call_operand.vmem [shape: f32[1,16], index: 10, kind: input, shape index: {}]
  %s11 = inlined_call_operand.vmem [shape: f32[1,208,32], index: 11, kind: input, shape index: {}]
  %s12 = inlined_call_operand.vmem [shape: f32[1,1,32], index: 12, kind: input, shape index: {}]
  %s13 = inlined_call_operand.vmem [shape: f32[32,32], index: 13, kind: input, shape index: {}]
  %s14 = inlined_call_operand.vmem [shape: f32[1,32], index: 14, kind: input, shape index: {}]
  %s15 = inlined_call_operand.vmem [shape: f32[1,32], index: 15, kind: input, shape index: {}]
  %s16 = inlined_call_operand.vmem [shape: f32[1,32], index: 16, kind: input, shape index: {}]
  %s17 = inlined_call_operand.hbm [shape: f32[12,32], index: 17, kind: output, shape index: {}]
  %s18 = sld [smem:[#allocation0]]
  $region89: #{tpu_custom_call.1} parent=0
    _
  %s20 = ssub.s32 1, %s18
  %s21 = scalar_select 0, %s20, %s18
  $region1: #{tpu_custom_call.1} parent=0
    #allocation5 [shape = 'u8[512]{0}', space=smem, size = 0x200, scoped, tag = 'input window, operand 0, single buffered']
    #allocation6 [shape = 's32[1]{0}', space=sflag, size = 0x4, scoped, tag = 'scoped memory for tpu_custom_call.1']
    #allocation7 [shape = 's32[1]{0}', space=sflag, size = 0x4, scoped, tag = 'scoped memory for tpu_custom_call.1']
    #allocation8 [shape = 'u8[8192]{0}', space=vmem, size = 0x2000, scoped, tag = 'output window, operand 0, single buffered']
    %22 = vsyncpa [#allocation7], 0
    %23 = vsyncpa [#allocation6], 0
    // Predicated region
    $region2: #{tpu_custom_call.1} parent=1 // pred_check
      _
    $region3: #{tpu_custom_call.1} parent=1 // pred_check_branch
      %25 = sbr.rel (0) target = $region5
    $region4: #{tpu_custom_call.1} parent=1 // pred_region
      %s27 = ssub.s32 16, 16
      %28 = vsyncadd [#allocation7], %s27
      %s30 = sshll.u32 %s0, 4
      %s31 = int_to_ptr.vmem [resolvable:$true] %s30
      %33 = dma.vmem_to_smem %s31, 16, [#allocation5], [#allocation7]
    $region5: #{tpu_custom_call.1} parent=1 // pred_fallthru
      _
    // Predicated region
    $region6: #{tpu_custom_call.1} parent=1 // pred_check
      _
    $region7: #{tpu_custom_call.1} parent=1 // pred_check_branch
      %35 = sbr.rel (0) target = $region9
    $region8: #{tpu_custom_call.1} parent=1 // pred_region
      _
    $region9: #{tpu_custom_call.1} parent=1 // pred_fallthru
      _
    // Predicated region
    $region10: #{tpu_custom_call.1} parent=1 // pred_check
      _
    $region11: #{tpu_custom_call.1} parent=1 // pred_check_branch
      %37 = sbr.rel (0) target = $region13
    $region12: #{tpu_custom_call.1} parent=1 // pred_region
      _
    $region13: #{tpu_custom_call.1} parent=1 // pred_fallthru
      _
    // Predicated region
    $region14: #{tpu_custom_call.1} parent=1 // pred_check
      _
    $region15: #{tpu_custom_call.1} parent=1 // pred_check_branch
      %39 = sbr.rel (0) target = $region17
    $region16: #{tpu_custom_call.1} parent=1 // pred_region
      _
    $region17: #{tpu_custom_call.1} parent=1 // pred_fallthru
      _
    // Predicated region
    $region18: #{tpu_custom_call.1} parent=1 // pred_check
      _
    $region19: #{tpu_custom_call.1} parent=1 // pred_check_branch
      %41 = sbr.rel (0) target = $region21
    $region20: #{tpu_custom_call.1} parent=1 // pred_region
      _
    $region21: #{tpu_custom_call.1} parent=1 // pred_fallthru
      _
    // Predicated region
    $region22: #{tpu_custom_call.1} parent=1 // pred_check
      _
    $region23: #{tpu_custom_call.1} parent=1 // pred_check_branch
      %43 = sbr.rel (0) target = $region25
    $region24: #{tpu_custom_call.1} parent=1 // pred_region
      _
    $region25: #{tpu_custom_call.1} parent=1 // pred_fallthru
      _
    // Predicated region
    $region26: #{tpu_custom_call.1} parent=1 // pred_check
      _
    $region27: #{tpu_custom_call.1} parent=1 // pred_check_branch
      %45 = sbr.rel (0) target = $region29
    $region28: #{tpu_custom_call.1} parent=1 // pred_region
      _
    $region29: #{tpu_custom_call.1} parent=1 // pred_fallthru
      _
    // Predicated region
    $region30: #{tpu_custom_call.1} parent=1 // pred_check
      _
    $region31: #{tpu_custom_call.1} parent=1 // pred_check_branch
      %47 = sbr.rel (0) target = $region33
    $region32: #{tpu_custom_call.1} parent=1 // pred_region
      _
    $region33: #{tpu_custom_call.1} parent=1 // pred_fallthru
      _
    // Predicated region
    $region34: #{tpu_custom_call.1} parent=1 // pred_check
      _
    $region35: #{tpu_custom_call.1} parent=1 // pred_check_branch
      %49 = sbr.rel (0) target = $region37
    $region36: #{tpu_custom_call.1} parent=1 // pred_region
      _
    $region37: #{tpu_custom_call.1} parent=1 // pred_fallthru
      _
    // Predicated region
    $region38: #{tpu_custom_call.1} parent=1 // pred_check
      _
    $region39: #{tpu_custom_call.1} parent=1 // pred_check_branch
      %51 = sbr.rel (0) target = $region41
    $region40: #{tpu_custom_call.1} parent=1 // pred_region
      _
    $region41: #{tpu_custom_call.1} parent=1 // pred_fallthru
      _
    // Predicated region
    $region42: #{tpu_custom_call.1} parent=1 // pred_check
      _
    $region43: #{tpu_custom_call.1} parent=1 // pred_check_branch
      %53 = sbr.rel (0) target = $region45
    $region44: #{tpu_custom_call.1} parent=1 // pred_region
      _
    $region45: #{tpu_custom_call.1} parent=1 // pred_fallthru
      _
    // Predicated region
    $region46: #{tpu_custom_call.1} parent=1 // pred_check
      _
    $region47: #{tpu_custom_call.1} parent=1 // pred_check_branch
      %55 = sbr.rel (0) target = $region49
    $region48: #{tpu_custom_call.1} parent=1 // pred_region
      _
    $region49: #{tpu_custom_call.1} parent=1 // pred_fallthru
      _
    // Predicated region
    $region50: #{tpu_custom_call.1} parent=1 // pred_check
      _
    $region51: #{tpu_custom_call.1} parent=1 // pred_check_branch
      %57 = sbr.rel (0) target = $region53
    $region52: #{tpu_custom_call.1} parent=1 // pred_region
      _
    $region53: #{tpu_custom_call.1} parent=1 // pred_fallthru
      _
    // Predicated region
    $region54: #{tpu_custom_call.1} parent=1 // pred_check
      _
    $region55: #{tpu_custom_call.1} parent=1 // pred_check_branch
      %59 = sbr.rel (0) target = $region57
    $region56: #{tpu_custom_call.1} parent=1 // pred_region
      _
    $region57: #{tpu_custom_call.1} parent=1 // pred_fallthru
      _
    // Predicated region
    $region58: #{tpu_custom_call.1} parent=1 // pred_check
      _
    $region59: #{tpu_custom_call.1} parent=1 // pred_check_branch
      %61 = sbr.rel (0) target = $region61
    $region60: #{tpu_custom_call.1} parent=1 // pred_region
      _
    $region61: #{tpu_custom_call.1} parent=1 // pred_fallthru
      _
    // Predicated region
    $region62: #{tpu_custom_call.1} parent=1 // pred_check
      _
    $region63: #{tpu_custom_call.1} parent=1 // pred_check_branch
      %63 = sbr.rel (0) target = $region65
    $region64: #{tpu_custom_call.1} parent=1 // pred_region
      _
    $region65: #{tpu_custom_call.1} parent=1 // pred_fallthru
      _
    // Predicated region
    $region66: #{tpu_custom_call.1} parent=1 // pred_check
      _
    $region67: #{tpu_custom_call.1} parent=1 // pred_check_branch
      %65 = sbr.rel (0) target = $region69
    $region68: #{tpu_custom_call.1} parent=1 // pred_region
      _
    $region69: #{tpu_custom_call.1} parent=1 // pred_fallthru
      _
    // Predicated region
    $region70: #{tpu_custom_call.1} parent=1 // pred_check
      _
    $region71: #{tpu_custom_call.1} parent=1 // pred_check_branch
      %67 = sbr.rel (0) target = $region73
    $region72: #{tpu_custom_call.1} parent=1 // pred_region
      %68 = dma.done [#allocation7], 16
    $region73: #{tpu_custom_call.1} parent=1 // pred_fallthru
      _
    %69 = sfence
    %v70 = vld [vmem:[%s1] sm:$0xff]
    %v71 = vld [vmem:[%s1 + $0x8] sm:$0xf]
    %v72 = vld [vmem:[%s3] sm:$0xff]
    %v73 = vld [vmem:[%s3 + $0x8] sm:$0xff]
    %v74 = vld [vmem:[%s3 + $0x10] sm:$0xff]
    %v75 = vld [vmem:[%s4] sm:$0xff]
    %v76 = vld [vmem:[%s4 + $0x8] sm:$0xff]
    %v77 = vld [vmem:[%s4 + $0x10] sm:$0xff]
    %v78 = vld [vmem:[%s2] sm:$0xff]
    %v79 = vld [vmem:[%s2 + $0x8] sm:$0xff]
    %v80 = vld [vmem:[%s2 + $0x10] sm:$0xff]
    %v81 = vld [vmem:[%s5] sm:$0xff]
    %v82 = vld [vmem:[%s6] sm:$0x1]
    %v84 = vlaneseq
    %v85 = vshrl.u32 %v84, 7
    %v86 = vsub.s32 0, %v85
    %v87 = vrot.slane %v82, %v86
    %vm89 = vcmask 64512
    %v91 = vsel %vm89, %v78, 0
    %v94 = vsel %vm89, %v79, 0
    %v97 = vsel %vm89, %v80, 0
    %99 = vmatprep.subr.mxu0 0.0
    %100 = vmatpush1.msra.mxu0 0.0
    %101 = vmatprep.subr.mxu0 0.0
    %102 = vmatpush1.msra.mxu0 0.0
    %103 = vmatprep.subr.mxu0 0.0
    %104 = vmatpush1.msra.mxu0 0.0
    %105 = vmatprep.subr.mxu0 0.0
    %106 = vmatpush1.msra.mxu0 0.0
    %107 = vmatprep.subr.mxu0 0.0
    %108 = vmatpush1.msra.mxu0 0.0
    %109 = vmatprep.subr.mxu0 0.0
    %110 = vmatpush1.msra.mxu0 0.0
    %111 = vmatprep.subr.mxu0 0.0
    %112 = vmatpush1.msra.mxu0 0.0
    %113 = vmatprep.subr.mxu0 0.0
    %114 = vmatpush1.msra.mxu0 0.0
    %115 = vmatprep.subr.mxu0 0.0
    %116 = vmatpush1.msra.mxu0 0.0
    %117 = vmatprep.subr.mxu0 0.0
    %118 = vmatpush1.msra.mxu0 0.0
    %119 = vmatprep.subr.mxu0 0.0
    %120 = vmatpush1.msra.mxu0 0.0
    %121 = vmatprep.subr.mxu0 0.0
    %122 = vmatpush1.msra.mxu0 0.0
    %123 = vmatprep.subr.mxu0 0.0
    %124 = vmatpush1.msra.mxu0 0.0
    %125 = vmatprep.subr.mxu0 0.0
    %126 = vmatpush1.msra.mxu0 0.0
    %127 = vmatprep.subr.mxu0 0.0
    %128 = vmatpush1.msra.mxu0 0.0
    %129 = vmatprep.subr.mxu0 0.0
    %130 = vmatpush1.msra.mxu0 %v81
    %131 = vmatprep.subr.mxu0 0.0
    %132 = vmatpush2.msra.mxu0 0.0
    %133 = vmatprep.subr.mxu0 0.0
    %134 = vmatpush2.msra.mxu0 0.0
    %135 = vmatprep.subr.mxu0 0.0
    %136 = vmatpush2.msra.mxu0 0.0
    %137 = vmatprep.subr.mxu0 0.0
    %138 = vmatpush2.msra.mxu0 0.0
    %139 = vmatprep.subr.mxu0 0.0
    %140 = vmatpush2.msra.mxu0 0.0
    %141 = vmatprep.subr.mxu0 0.0
    %142 = vmatpush2.msra.mxu0 0.0
    %143 = vmatprep.subr.mxu0 0.0
    %144 = vmatpush2.msra.mxu0 0.0
    %145 = vmatprep.subr.mxu0 0.0
    %146 = vmatpush2.msra.mxu0 0.0
    %147 = vmatprep.subr.mxu0 0.0
    %148 = vmatpush2.msra.mxu0 0.0
    %149 = vmatprep.subr.mxu0 0.0
    %150 = vmatpush2.msra.mxu0 0.0
    %151 = vmatprep.subr.mxu0 0.0
    %152 = vmatpush2.msra.mxu0 0.0
    %153 = vmatprep.subr.mxu0 0.0
    %154 = vmatpush2.msra.mxu0 0.0
    %155 = vmatprep.subr.mxu0 0.0
    %156 = vmatpush2.msra.mxu0 0.0
    %157 = vmatprep.subr.mxu0 0.0
    %158 = vmatpush2.msra.mxu0 0.0
    %159 = vmatprep.subr.mxu0 0.0
    %160 = vmatpush2.msra.mxu0 0.0
    %161 = vmatprep.subr.mxu0 0.0
    %162 = vmatpush2.msra.mxu0 0.0
    %163 = vmatprep.mubr.f32.mxu0 0.0
    %164 = vmatmul.mubr.f32.gmra.mxu0 %v91
    %v165 = vpop.f32.mrf.mxu0
    %v166 = vadd.f32 %v87, %v165
    %v167 = vpop.f32.mrf.mxu0
    %168 = vmatprep.mubr.f32.mxu0 0.0
    %169 = vmatmul.mubr.f32.gmra.mxu0 %v94
    %v170 = vpop.f32.mrf.mxu0
    %v171 = vadd.f32 %v87, %v170
    %v172 = vpop.f32.mrf.mxu0
    %173 = vmatprep.mubr.f32.mxu0 0.0
    %174 = vmatmul.mubr.f32.gmra.mxu0 %v97
    %v175 = vpop.f32.mrf.mxu0
    %v176 = vadd.f32 %v87, %v175
    %v177 = vpop.f32.mrf.mxu0
    %178 = vdwg.mxu0
    %vm179 = vcmask 97280
    %v181 = vsel %vm179, %v75, 0
    %v184 = vsel %vm179, %v76, 0
    %v187 = vsel %vm179, %v77, 0
    %vm189 = vcmask 1043456
    %v191 = vsel %vm189, %v71, 0
    %193 = vmatprep.subr.mxu0 0.0
    %194 = vmatpush1.msra.mxu0 0.0
    %195 = vmatprep.subr.mxu0 0.0
    %196 = vmatpush1.msra.mxu0 0.0
    %197 = vmatprep.subr.mxu0 0.0
    %198 = vmatpush1.msra.mxu0 0.0
    %199 = vmatprep.subr.mxu0 0.0
    %200 = vmatpush1.msra.mxu0 0.0
    %201 = vmatprep.subr.mxu0 0.0
    %202 = vmatpush1.msra.mxu0 0.0
    %203 = vmatprep.subr.mxu0 0.0
    %204 = vmatpush1.msra.mxu0 0.0
    %205 = vmatprep.subr.mxu0 0.0
    %206 = vmatpush1.msra.mxu0 0.0
    %207 = vmatprep.subr.mxu0 0.0
    %208 = vmatpush1.msra.mxu0 0.0
    %209 = vmatprep.subr.mxu0 0.0
    %210 = vmatpush1.msra.mxu0 0.0
    %211 = vmatprep.subr.mxu0 0.0
    %212 = vmatpush1.msra.mxu0 0.0
    %213 = vmatprep.subr.mxu0 0.0
    %214 = vmatpush1.msra.mxu0 0.0
    %215 = vmatprep.subr.mxu0 0.0
    %216 = vmatpush1.msra.mxu0 0.0
    %217 = vmatprep.subr.mxu0 0.0
    %218 = vmatpush1.msra.mxu0 0.0
    %219 = vmatprep.subr.mxu0 0.0
    %220 = vmatpush1.msra.mxu0 0.0
    %221 = vmatprep.subr.mxu0 0.0
    %222 = vmatpush1.msra.mxu0 %v191
    %223 = vmatprep.subr.mxu0 0.0
    %224 = vmatpush1.msra.mxu0 %v70
    %225 = vmatprep.subr.mxu0 0.0
    %226 = vmatpush2.msra.mxu0 0.0
    %227 = vmatprep.subr.mxu0 0.0
    %228 = vmatpush2.msra.mxu0 0.0
    %229 = vmatprep.subr.mxu0 0.0
    %230 = vmatpush2.msra.mxu0 0.0
    %231 = vmatprep.subr.mxu0 0.0
    %232 = vmatpush2.msra.mxu0 0.0
    %233 = vmatprep.subr.mxu0 0.0
    %234 = vmatpush2.msra.mxu0 0.0
    %235 = vmatprep.subr.mxu0 0.0
    %236 = vmatpush2.msra.mxu0 0.0
    %237 = vmatprep.subr.mxu0 0.0
    %238 = vmatpush2.msra.mxu0 0.0
    %239 = vmatprep.subr.mxu0 0.0
    %240 = vmatpush2.msra.mxu0 0.0
    %241 = vmatprep.subr.mxu0 0.0
    %242 = vmatpush2.msra.mxu0 0.0
    %243 = vmatprep.subr.mxu0 0.0
    %244 = vmatpush2.msra.mxu0 0.0
    %245 = vmatprep.subr.mxu0 0.0
    %246 = vmatpush2.msra.mxu0 0.0
    %247 = vmatprep.subr.mxu0 0.0
    %248 = vmatpush2.msra.mxu0 0.0
    %249 = vmatprep.subr.mxu0 0.0
    %250 = vmatpush2.msra.mxu0 0.0
    %251 = vmatprep.subr.mxu0 0.0
    %252 = vmatpush2.msra.mxu0 0.0
    %253 = vmatprep.subr.mxu0 0.0
    %254 = vmatpush2.msra.mxu0 0.0
    %255 = vmatprep.subr.mxu0 0.0
    %256 = vmatpush2.msra.mxu0 0.0
    %257 = vmatprep.mubr.f32.mxu0 0.0
    %258 = vmatmul.mubr.f32.gmra.mxu0 %v181
    %v259 = vpop.f32.mrf.mxu0
    %v260 = vadd.f32 0.0, %v259
    %v261 = vpop.f32.mrf.mxu0
    %262 = vmatprep.mubr.f32.mxu0 0.0
    %263 = vmatmul.mubr.f32.gmra.mxu0 %v184
    %v264 = vpop.f32.mrf.mxu0
    %v265 = vadd.f32 0.0, %v264
    %v266 = vpop.f32.mrf.mxu0
    %267 = vmatprep.mubr.f32.mxu0 0.0
    %268 = vmatmul.mubr.f32.gmra.mxu0 %v187
    %v269 = vpop.f32.mrf.mxu0
    %v270 = vadd.f32 0.0, %v269
    %v271 = vpop.f32.mrf.mxu0
    %272 = vdwg.mxu0
    %v274 = vsel %vm179, %v72, 0
    %v277 = vsel %vm179, %v73, 0
    %v280 = vsel %vm179, %v74, 0
    %282 = vmatprep.subr.mxu0 0.0
    %283 = vmatpush1.msra.mxu0 0.0
    %284 = vmatprep.subr.mxu0 0.0
    %285 = vmatpush1.msra.mxu0 0.0
    %286 = vmatprep.subr.mxu0 0.0
    %287 = vmatpush1.msra.mxu0 0.0
    %288 = vmatprep.subr.mxu0 0.0
    %289 = vmatpush1.msra.mxu0 0.0
    %290 = vmatprep.subr.mxu0 0.0
    %291 = vmatpush1.msra.mxu0 0.0
    %292 = vmatprep.subr.mxu0 0.0
    %293 = vmatpush1.msra.mxu0 0.0
    %294 = vmatprep.subr.mxu0 0.0
    %295 = vmatpush1.msra.mxu0 0.0
    %296 = vmatprep.subr.mxu0 0.0
    %297 = vmatpush1.msra.mxu0 0.0
    %298 = vmatprep.subr.mxu0 0.0
    %299 = vmatpush1.msra.mxu0 0.0
    %300 = vmatprep.subr.mxu0 0.0
    %301 = vmatpush1.msra.mxu0 0.0
    %302 = vmatprep.subr.mxu0 0.0
    %303 = vmatpush1.msra.mxu0 0.0
    %304 = vmatprep.subr.mxu0 0.0
    %305 = vmatpush1.msra.mxu0 0.0
    %306 = vmatprep.subr.mxu0 0.0
    %307 = vmatpush1.msra.mxu0 0.0
    %308 = vmatprep.subr.mxu0 0.0
    %309 = vmatpush1.msra.mxu0 0.0
    %310 = vmatprep.subr.mxu0 0.0
    %311 = vmatpush1.msra.mxu0 %v191
    %312 = vmatprep.subr.mxu0 0.0
    %313 = vmatpush1.msra.mxu0 %v70
    %314 = vmatprep.subr.mxu0 0.0
    %315 = vmatpush2.msra.mxu0 0.0
    %316 = vmatprep.subr.mxu0 0.0
    %317 = vmatpush2.msra.mxu0 0.0
    %318 = vmatprep.subr.mxu0 0.0
    %319 = vmatpush2.msra.mxu0 0.0
    %320 = vmatprep.subr.mxu0 0.0
    %321 = vmatpush2.msra.mxu0 0.0
    %322 = vmatprep.subr.mxu0 0.0
    %323 = vmatpush2.msra.mxu0 0.0
    %324 = vmatprep.subr.mxu0 0.0
    %325 = vmatpush2.msra.mxu0 0.0
    %326 = vmatprep.subr.mxu0 0.0
    %327 = vmatpush2.msra.mxu0 0.0
    %328 = vmatprep.subr.mxu0 0.0
    %329 = vmatpush2.msra.mxu0 0.0
    %330 = vmatprep.subr.mxu0 0.0
    %331 = vmatpush2.msra.mxu0 0.0
    %332 = vmatprep.subr.mxu0 0.0
    %333 = vmatpush2.msra.mxu0 0.0
    %334 = vmatprep.subr.mxu0 0.0
    %335 = vmatpush2.msra.mxu0 0.0
    %336 = vmatprep.subr.mxu0 0.0
    %337 = vmatpush2.msra.mxu0 0.0
    %338 = vmatprep.subr.mxu0 0.0
    %339 = vmatpush2.msra.mxu0 0.0
    %340 = vmatprep.subr.mxu0 0.0
    %341 = vmatpush2.msra.mxu0 0.0
    %342 = vmatprep.subr.mxu0 0.0
    %343 = vmatpush2.msra.mxu0 0.0
    %344 = vmatprep.subr.mxu0 0.0
    %345 = vmatpush2.msra.mxu0 0.0
    %346 = vmatprep.mubr.f32.mxu0 0.0
    %347 = vmatmul.mubr.f32.gmra.mxu0 %v274
    %v348 = vpop.f32.mrf.mxu0
    %v349 = vadd.f32 0.0, %v348
    %v350 = vpop.f32.mrf.mxu0
    %351 = vmatprep.mubr.f32.mxu0 0.0
    %352 = vmatmul.mubr.f32.gmra.mxu0 %v277
    %v353 = vpop.f32.mrf.mxu0
    %v354 = vadd.f32 0.0, %v353
    %v355 = vpop.f32.mrf.mxu0
    %356 = vmatprep.mubr.f32.mxu0 0.0
    %357 = vmatmul.mubr.f32.gmra.mxu0 %v280
    %v358 = vpop.f32.mrf.mxu0
    %v359 = vadd.f32 0.0, %v358
    %v360 = vpop.f32.mrf.mxu0
    %361 = vdwg.mxu0
    %v362 = vld [vmem:[%s7] sm:$0xff]
    %v363 = vld [vmem:[%s7 + $0x8] sm:$0xff]
    %v364 = vld [vmem:[%s8] sm:$0xff]
    %v365 = vld [vmem:[%s8 + $0x8] sm:$0xff]
    %vm366 = vcmask 130048
    %v368 = vsel %vm366, %v349, 0
    %v371 = vsel %vm366, %v354, 0
    %v374 = vsel %vm366, %v359, 0
    %376 = vmatprep.subr.mxu0 0.0
    %377 = vmatpush1.msra.mxu0 0.0
    %378 = vmatprep.subr.mxu0 0.0
    %379 = vmatpush1.msra.mxu0 0.0
    %380 = vmatprep.subr.mxu0 0.0
    %381 = vmatpush1.msra.mxu0 0.0
    %382 = vmatprep.subr.mxu0 0.0
    %383 = vmatpush1.msra.mxu0 0.0
    %384 = vmatprep.subr.mxu0 0.0
    %385 = vmatpush1.msra.mxu0 0.0
    %386 = vmatprep.subr.mxu0 0.0
    %387 = vmatpush1.msra.mxu0 0.0
    %388 = vmatprep.subr.mxu0 0.0
    %389 = vmatpush1.msra.mxu0 0.0
    %390 = vmatprep.subr.mxu0 0.0
    %391 = vmatpush1.msra.mxu0 0.0
    %392 = vmatprep.subr.mxu0 0.0
    %393 = vmatpush1.msra.mxu0 0.0
    %394 = vmatprep.subr.mxu0 0.0
    %395 = vmatpush1.msra.mxu0 0.0
    %396 = vmatprep.subr.mxu0 0.0
    %397 = vmatpush1.msra.mxu0 0.0
    %398 = vmatprep.subr.mxu0 0.0
    %399 = vmatpush1.msra.mxu0 0.0
    %400 = vmatprep.subr.mxu0 0.0
    %401 = vmatpush1.msra.mxu0 0.0
    %402 = vmatprep.subr.mxu0 0.0
    %403 = vmatpush1.msra.mxu0 0.0
    %404 = vmatprep.subr.mxu0 0.0
    %405 = vmatpush1.msra.mxu0 %v365
    %406 = vmatprep.subr.mxu0 0.0
    %407 = vmatpush1.msra.mxu0 %v364
    %408 = vmatprep.subr.mxu0 0.0
    %409 = vmatpush2.msra.mxu0 0.0
    %410 = vmatprep.subr.mxu0 0.0
    %411 = vmatpush2.msra.mxu0 0.0
    %412 = vmatprep.subr.mxu0 0.0
    %413 = vmatpush2.msra.mxu0 0.0
    %414 = vmatprep.subr.mxu0 0.0
    %415 = vmatpush2.msra.mxu0 0.0
    %416 = vmatprep.subr.mxu0 0.0
    %417 = vmatpush2.msra.mxu0 0.0
    %418 = vmatprep.subr.mxu0 0.0
    %419 = vmatpush2.msra.mxu0 0.0
    %420 = vmatprep.subr.mxu0 0.0
    %421 = vmatpush2.msra.mxu0 0.0
    %422 = vmatprep.subr.mxu0 0.0
    %423 = vmatpush2.msra.mxu0 0.0
    %424 = vmatprep.subr.mxu0 0.0
    %425 = vmatpush2.msra.mxu0 0.0
    %426 = vmatprep.subr.mxu0 0.0
    %427 = vmatpush2.msra.mxu0 0.0
    %428 = vmatprep.subr.mxu0 0.0
    %429 = vmatpush2.msra.mxu0 0.0
    %430 = vmatprep.subr.mxu0 0.0
    %431 = vmatpush2.msra.mxu0 0.0
    %432 = vmatprep.subr.mxu0 0.0
    %433 = vmatpush2.msra.mxu0 0.0
    %434 = vmatprep.subr.mxu0 0.0
    %435 = vmatpush2.msra.mxu0 0.0
    %436 = vmatprep.subr.mxu0 0.0
    %437 = vmatpush2.msra.mxu0 0.0
    %438 = vmatprep.subr.mxu0 0.0
    %439 = vmatpush2.msra.mxu0 0.0
    %440 = vmatprep.mubr.f32.mxu0 0.0
    %441 = vmatmul.mubr.f32.gmra.mxu0 %v368
    %v442 = vpop.f32.mrf.mxu0
    %v443 = vadd.f32 0.0, %v442
    %v444 = vpop.f32.mrf.mxu0
    %445 = vmatprep.mubr.f32.mxu0 0.0
    %446 = vmatmul.mubr.f32.gmra.mxu0 %v371
    %v447 = vpop.f32.mrf.mxu0
    %v448 = vadd.f32 0.0, %v447
    %v449 = vpop.f32.mrf.mxu0
    %450 = vmatprep.mubr.f32.mxu0 0.0
    %451 = vmatmul.mubr.f32.gmra.mxu0 %v374
    %v452 = vpop.f32.mrf.mxu0
    %v453 = vadd.f32 0.0, %v452
    %v454 = vpop.f32.mrf.mxu0
    %455 = vdwg.mxu0
    %v457 = vsel %vm366, %v260, 0
    %v460 = vsel %vm366, %v265, 0
    %v463 = vsel %vm366, %v270, 0
    %465 = vmatprep.subr.mxu0 0.0
    %466 = vmatpush1.msra.mxu0 0.0
    %467 = vmatprep.subr.mxu0 0.0
    %468 = vmatpush1.msra.mxu0 0.0
    %469 = vmatprep.subr.mxu0 0.0
    %470 = vmatpush1.msra.mxu0 0.0
    %471 = vmatprep.subr.mxu0 0.0
    %472 = vmatpush1.msra.mxu0 0.0
    %473 = vmatprep.subr.mxu0 0.0
    %474 = vmatpush1.msra.mxu0 0.0
    %475 = vmatprep.subr.mxu0 0.0
    %476 = vmatpush1.msra.mxu0 0.0
    %477 = vmatprep.subr.mxu0 0.0
    %478 = vmatpush1.msra.mxu0 0.0
    %479 = vmatprep.subr.mxu0 0.0
    %480 = vmatpush1.msra.mxu0 0.0
    %481 = vmatprep.subr.mxu0 0.0
    %482 = vmatpush1.msra.mxu0 0.0
    %483 = vmatprep.subr.mxu0 0.0
    %484 = vmatpush1.msra.mxu0 0.0
    %485 = vmatprep.subr.mxu0 0.0
    %486 = vmatpush1.msra.mxu0 0.0
    %487 = vmatprep.subr.mxu0 0.0
    %488 = vmatpush1.msra.mxu0 0.0
    %489 = vmatprep.subr.mxu0 0.0
    %490 = vmatpush1.msra.mxu0 0.0
    %491 = vmatprep.subr.mxu0 0.0
    %492 = vmatpush1.msra.mxu0 0.0
    %493 = vmatprep.subr.mxu0 0.0
    %494 = vmatpush1.msra.mxu0 %v363
    %495 = vmatprep.subr.mxu0 0.0
    %496 = vmatpush1.msra.mxu0 %v362
    %497 = vmatprep.subr.mxu0 0.0
    %498 = vmatpush2.msra.mxu0 0.0
    %499 = vmatprep.subr.mxu0 0.0
    %500 = vmatpush2.msra.mxu0 0.0
    %501 = vmatprep.subr.mxu0 0.0
    %502 = vmatpush2.msra.mxu0 0.0
    %503 = vmatprep.subr.mxu0 0.0
    %504 = vmatpush2.msra.mxu0 0.0
    %505 = vmatprep.subr.mxu0 0.0
    %506 = vmatpush2.msra.mxu0 0.0
    %507 = vmatprep.subr.mxu0 0.0
    %508 = vmatpush2.msra.mxu0 0.0
    %509 = vmatprep.subr.mxu0 0.0
    %510 = vmatpush2.msra.mxu0 0.0
    %511 = vmatprep.subr.mxu0 0.0
    %512 = vmatpush2.msra.mxu0 0.0
    %513 = vmatprep.subr.mxu0 0.0
    %514 = vmatpush2.msra.mxu0 0.0
    %515 = vmatprep.subr.mxu0 0.0
    %516 = vmatpush2.msra.mxu0 0.0
    %517 = vmatprep.subr.mxu0 0.0
    %518 = vmatpush2.msra.mxu0 0.0
    %519 = vmatprep.subr.mxu0 0.0
    %520 = vmatpush2.msra.mxu0 0.0
    %521 = vmatprep.subr.mxu0 0.0
    %522 = vmatpush2.msra.mxu0 0.0
    %523 = vmatprep.subr.mxu0 0.0
    %524 = vmatpush2.msra.mxu0 0.0
    %525 = vmatprep.subr.mxu0 0.0
    %526 = vmatpush2.msra.mxu0 0.0
    %527 = vmatprep.subr.mxu0 0.0
    %528 = vmatpush2.msra.mxu0 0.0
    %529 = vmatprep.mubr.f32.mxu0 0.0
    %530 = vmatmul.mubr.f32.gmra.mxu0 %v457
    %v531 = vpop.f32.mrf.mxu0
    %v532 = vadd.f32 %v443, %v531
    %v533 = vpop.f32.mrf.mxu0
    %534 = vmatprep.mubr.f32.mxu0 0.0
    %535 = vmatmul.mubr.f32.gmra.mxu0 %v460
    %v536 = vpop.f32.mrf.mxu0
    %v537 = vadd.f32 %v448, %v536
    %v538 = vpop.f32.mrf.mxu0
    %539 = vmatprep.mubr.f32.mxu0 0.0
    %540 = vmatmul.mubr.f32.gmra.mxu0 %v463
    %v541 = vpop.f32.mrf.mxu0
    %v542 = vadd.f32 %v453, %v541
    %v543 = vpop.f32.mrf.mxu0
    %544 = vdwg.mxu0
    %v545 = vld [vmem:[%s9] sm:$0xff]
    %v546 = vld [vmem:[%s9 + $0x8] sm:$0xff]
    %v548 = vsel %vm366, %v166, 0
    %v551 = vsel %vm366, %v171, 0
    %v554 = vsel %vm366, %v176, 0
    %556 = vmatprep.subr.mxu0 0.0
    %557 = vmatpush1.msra.mxu0 0.0
    %558 = vmatprep.subr.mxu0 0.0
    %559 = vmatpush1.msra.mxu0 0.0
    %560 = vmatprep.subr.mxu0 0.0
    %561 = vmatpush1.msra.mxu0 0.0
    %562 = vmatprep.subr.mxu0 0.0
    %563 = vmatpush1.msra.mxu0 0.0
    %564 = vmatprep.subr.mxu0 0.0
    %565 = vmatpush1.msra.mxu0 0.0
    %566 = vmatprep.subr.mxu0 0.0
    %567 = vmatpush1.msra.mxu0 0.0
    %568 = vmatprep.subr.mxu0 0.0
    %569 = vmatpush1.msra.mxu0 0.0
    %570 = vmatprep.subr.mxu0 0.0
    %571 = vmatpush1.msra.mxu0 0.0
    %572 = vmatprep.subr.mxu0 0.0
    %573 = vmatpush1.msra.mxu0 0.0
    %574 = vmatprep.subr.mxu0 0.0
    %575 = vmatpush1.msra.mxu0 0.0
    %576 = vmatprep.subr.mxu0 0.0
    %577 = vmatpush1.msra.mxu0 0.0
    %578 = vmatprep.subr.mxu0 0.0
    %579 = vmatpush1.msra.mxu0 0.0
    %580 = vmatprep.subr.mxu0 0.0
    %581 = vmatpush1.msra.mxu0 0.0
    %582 = vmatprep.subr.mxu0 0.0
    %583 = vmatpush1.msra.mxu0 0.0
    %584 = vmatprep.subr.mxu0 0.0
    %585 = vmatpush1.msra.mxu0 %v546
    %586 = vmatprep.subr.mxu0 0.0
    %587 = vmatpush1.msra.mxu0 %v545
    %588 = vmatprep.subr.mxu0 0.0
    %589 = vmatpush2.msra.mxu0 0.0
    %590 = vmatprep.subr.mxu0 0.0
    %591 = vmatpush2.msra.mxu0 0.0
    %592 = vmatprep.subr.mxu0 0.0
    %593 = vmatpush2.msra.mxu0 0.0
    %594 = vmatprep.subr.mxu0 0.0
    %595 = vmatpush2.msra.mxu0 0.0
    %596 = vmatprep.subr.mxu0 0.0
    %597 = vmatpush2.msra.mxu0 0.0
    %598 = vmatprep.subr.mxu0 0.0
    %599 = vmatpush2.msra.mxu0 0.0
    %600 = vmatprep.subr.mxu0 0.0
    %601 = vmatpush2.msra.mxu0 0.0
    %602 = vmatprep.subr.mxu0 0.0
    %603 = vmatpush2.msra.mxu0 0.0
    %604 = vmatprep.subr.mxu0 0.0
    %605 = vmatpush2.msra.mxu0 0.0
    %606 = vmatprep.subr.mxu0 0.0
    %607 = vmatpush2.msra.mxu0 0.0
    %608 = vmatprep.subr.mxu0 0.0
    %609 = vmatpush2.msra.mxu0 0.0
    %610 = vmatprep.subr.mxu0 0.0
    %611 = vmatpush2.msra.mxu0 0.0
    %612 = vmatprep.subr.mxu0 0.0
    %613 = vmatpush2.msra.mxu0 0.0
    %614 = vmatprep.subr.mxu0 0.0
    %615 = vmatpush2.msra.mxu0 0.0
    %616 = vmatprep.subr.mxu0 0.0
    %617 = vmatpush2.msra.mxu0 0.0
    %618 = vmatprep.subr.mxu0 0.0
    %619 = vmatpush2.msra.mxu0 0.0
    %620 = vmatprep.mubr.f32.mxu0 0.0
    %621 = vmatmul.mubr.f32.gmra.mxu0 %v548
    %v622 = vpop.f32.mrf.mxu0
    %v623 = vadd.f32 0.0, %v622
    %v624 = vpop.f32.mrf.mxu0
    %625 = vmatprep.mubr.f32.mxu0 0.0
    %626 = vmatmul.mubr.f32.gmra.mxu0 %v551
    %v627 = vpop.f32.mrf.mxu0
    %v628 = vadd.f32 0.0, %v627
    %v629 = vpop.f32.mrf.mxu0
    %630 = vmatprep.mubr.f32.mxu0 0.0
    %631 = vmatmul.mubr.f32.gmra.mxu0 %v554
    %v632 = vpop.f32.mrf.mxu0
    %v633 = vadd.f32 0.0, %v632
    %v634 = vpop.f32.mrf.mxu0
    %635 = vdwg.mxu0
    %v636 = vadd.f32 %v532, %v623
    %v637 = vadd.f32 %v537, %v628
    %v638 = vadd.f32 %v542, %v633
    %v639 = vld [vmem:[%s10] sm:$0x1]
    %v641 = vlaneseq
    %v642 = vshrl.u32 %v641, 7
    %v643 = vsub.s32 0, %v642
    %v644 = vrot.slane %v639, %v643
    %v646 = vadd.f32 %v636, %v644
    %v647 = vadd.f32 %v637, %v644
    %v648 = vadd.f32 %v638, %v644
    %v649 = vmul.f32 %v646, %v646
    %v650 = vmul.f32 %v647, %v647
    %v651 = vmul.f32 %v648, %v648
    %655 = vrot.lane.b32.xlu0 %v649, 16
    %v656 = vpop.permute.xlu0 %655
    %657 = vrot.lane.b32.xlu0 %v650, 16
    %v658 = vpop.permute.xlu0 %657
    %659 = vrot.lane.b32.xlu0 %v651, 16
    %v660 = vpop.permute.xlu0 %659
    %v664 = vsel %vm366, %v646, %v656
    %v665 = vsel %vm366, %v647, %v658
    %v666 = vsel %vm366, %v648, %v660
    %vm667 = vcmask 261120
    %v668 = vsel %vm667, %v664, 1.0
    %v669 = vsel %vm667, %v665, 1.0
    %v670 = vsel %vm667, %v666, 1.0
    %671 = vxpose.xlu0.b32.start [1/16] %v75, 128
    %672 = vxpose.xlu0.b32.cont [2/16] %v76, 128
    %673 = vxpose.xlu0.b32.cont [3/16] %v77, 128
    %674 = vxpose.xlu0.b32.cont [4/16] 0.0, 128
    %675 = vxpose.xlu0.b32.cont [5/16] 0.0, 128
    %676 = vxpose.xlu0.b32.cont [6/16] 0.0, 128
    %677 = vxpose.xlu0.b32.cont [7/16] 0.0, 128
    %678 = vxpose.xlu0.b32.cont [8/16] 0.0, 128
    %679 = vxpose.xlu0.b32.cont [9/16] 0.0, 128
    %680 = vxpose.xlu0.b32.cont [10/16] 0.0, 128
    %681 = vxpose.xlu0.b32.cont [11/16] 0.0, 128
    %682 = vxpose.xlu0.b32.cont [12/16] 0.0, 128
    %683 = vxpose.xlu0.b32.cont [13/16] 0.0, 128
    %684 = vxpose.xlu0.b32.cont [14/16] 0.0, 128
    %685 = vxpose.xlu0.b32.cont [15/16] 0.0, 128
    %686 = vxpose.xlu0.b32.end [16/16] 0.0, 128
    %v687 = vpop.trf.xlu0
    %v688 = vpop.trf.xlu0
    %v689 = vpop.trf.xlu0
    %v690 = vpop.trf.xlu0
    %v691 = vpop.trf.xlu0
    %v692 = vpop.trf.xlu0
    %v693 = vpop.trf.xlu0
    %v694 = vpop.trf.xlu0
    %v695 = vpop.trf.xlu0
    %v696 = vpop.trf.xlu0
    %v697 = vpop.trf.xlu0
    %v698 = vpop.trf.xlu0
    %v699 = vpop.trf.xlu0
    %v700 = vpop.trf.xlu0
    %v701 = vpop.trf.xlu0
    %v702 = vpop.trf.xlu0
    %vm703 = vcmask 195584
    %v705 = vsel %vm703, %v687, 0
    %v708 = vsel %vm703, %v688, 0
    %710 = vmatprep.subr.mxu0 0.0
    %711 = vmatpush1.msra.mxu0 0.0
    %712 = vmatprep.subr.mxu0 0.0
    %713 = vmatpush1.msra.mxu0 0.0
    %714 = vmatprep.subr.mxu0 0.0
    %715 = vmatpush1.msra.mxu0 0.0
    %716 = vmatprep.subr.mxu0 0.0
    %717 = vmatpush1.msra.mxu0 0.0
    %718 = vmatprep.subr.mxu0 0.0
    %719 = vmatpush1.msra.mxu0 0.0
    %720 = vmatprep.subr.mxu0 0.0
    %721 = vmatpush1.msra.mxu0 0.0
    %722 = vmatprep.subr.mxu0 0.0
    %723 = vmatpush1.msra.mxu0 0.0
    %724 = vmatprep.subr.mxu0 0.0
    %725 = vmatpush1.msra.mxu0 0.0
    %726 = vmatprep.subr.mxu0 0.0
    %727 = vmatpush1.msra.mxu0 0.0
    %728 = vmatprep.subr.mxu0 0.0
    %729 = vmatpush1.msra.mxu0 0.0
    %730 = vmatprep.subr.mxu0 0.0
    %731 = vmatpush1.msra.mxu0 0.0
    %732 = vmatprep.subr.mxu0 0.0
    %733 = vmatpush1.msra.mxu0 0.0
    %734 = vmatprep.subr.mxu0 0.0
    %735 = vmatpush1.msra.mxu0 0.0
    %736 = vmatprep.subr.mxu0 0.0
    %737 = vmatpush1.msra.mxu0 %v670
    %738 = vmatprep.subr.mxu0 0.0
    %739 = vmatpush1.msra.mxu0 %v669
    %740 = vmatprep.subr.mxu0 0.0
    %741 = vmatpush1.msra.mxu0 %v668
    %742 = vmatprep.subr.mxu0 0.0
    %743 = vmatpush2.msra.mxu0 0.0
    %744 = vmatprep.subr.mxu0 0.0
    %745 = vmatpush2.msra.mxu0 0.0
    %746 = vmatprep.subr.mxu0 0.0
    %747 = vmatpush2.msra.mxu0 0.0
    %748 = vmatprep.subr.mxu0 0.0
    %749 = vmatpush2.msra.mxu0 0.0
    %750 = vmatprep.subr.mxu0 0.0
    %751 = vmatpush2.msra.mxu0 0.0
    %752 = vmatprep.subr.mxu0 0.0
    %753 = vmatpush2.msra.mxu0 0.0
    %754 = vmatprep.subr.mxu0 0.0
    %755 = vmatpush2.msra.mxu0 0.0
    %756 = vmatprep.subr.mxu0 0.0
    %757 = vmatpush2.msra.mxu0 0.0
    %758 = vmatprep.subr.mxu0 0.0
    %759 = vmatpush2.msra.mxu0 0.0
    %760 = vmatprep.subr.mxu0 0.0
    %761 = vmatpush2.msra.mxu0 0.0
    %762 = vmatprep.subr.mxu0 0.0
    %763 = vmatpush2.msra.mxu0 0.0
    %764 = vmatprep.subr.mxu0 0.0
    %765 = vmatpush2.msra.mxu0 0.0
    %766 = vmatprep.subr.mxu0 0.0
    %767 = vmatpush2.msra.mxu0 0.0
    %768 = vmatprep.subr.mxu0 0.0
    %769 = vmatpush2.msra.mxu0 0.0
    %770 = vmatprep.subr.mxu0 0.0
    %771 = vmatpush2.msra.mxu0 0.0
    %772 = vmatprep.subr.mxu0 0.0
    %773 = vmatpush2.msra.mxu0 0.0
    %774 = vmatprep.mubr.f32.mxu0 0.0
    %775 = vmatmul.mubr.f32.gmra.mxu0 %v705
    %v776 = vpop.f32.mrf.mxu0
    %v777 = vadd.f32 0.0, %v776
    %v778 = vpop.f32.mrf.mxu0
    %779 = vmatprep.mubr.f32.mxu0 0.0
    %780 = vmatmul.mubr.f32.gmra.mxu0 %v708
    %v781 = vpop.f32.mrf.mxu0
    %v782 = vadd.f32 0.0, %v781
    %v783 = vpop.f32.mrf.mxu0
    %784 = vdwg.mxu0
    %v785 = vmax.f32 %v777, 1.0
    %v786 = vmax.f32 %v782, 1.0
    %788 = vset.pattern.permute.xlu0 32
    %789 = vperm.xlu0 %788, %v785
    %v790 = vpop.permute.xlu0 %789
    %793 = vset.pattern.permute.xlu0 32
    %794 = vperm.xlu0 %793, %v786
    %v795 = vpop.permute.xlu0 %794
    %v797 = vrcp.pop %v790
    %v798 = vmul.f32 %v777, %v797
    %v799 = vrcp.pop %v795
    %v800 = vmul.f32 %v782, %v799
    %v801 = vmul.f32 %v798, %v798
    %v802 = vmul.f32 %v800, %v800
    %805 = vrot.lane.b32.xlu0 %v801, 16
    %v806 = vpop.permute.xlu0 %805
    %807 = vrot.lane.b32.xlu0 %v802, 16
    %v808 = vpop.permute.xlu0 %807
    %v811 = vsub.f32 %v798, %v806
    %v812 = vsub.f32 %v800, %v808
    %v813 = vmax.f32 %v811, 0.0
    %v814 = vmax.f32 %v812, 0.0
    %v815 = vadd.f32 %v813, 1e-05
    %v816 = vadd.f32 %v814, 1e-05
    %v817 = vrsqrt.pop %v815
    %v818 = vmul.f32 %v815, %v817
    %vm819 = vcmp.eq.f32.partialorder %v815, inf
    %v820 = vsel %vm819, %v815, %v818
    %vm821 = vcmp.eq.f32.partialorder %v815, 0.0
    %v822 = vand.u32 %v815, 2147483648
    %v823 = vsel %vm821, %v822, %v820
    %v824 = vrsqrt.pop %v816
    %v825 = vmul.f32 %v816, %v824
    %vm826 = vcmp.eq.f32.partialorder %v816, inf
    %v827 = vsel %vm826, %v816, %v825
    %vm828 = vcmp.eq.f32.partialorder %v816, 0.0
    %v829 = vand.u32 %v816, 2147483648
    %v830 = vsel %vm828, %v829, %v827
    %831 = vst.msk [vmem:[#allocation2] sm:$0xff] %vm366, %v646
    %832 = vst.msk [vmem:[#allocation2 + $0x8] sm:$0xff] %vm366, %v647
    %833 = vst.msk [vmem:[#allocation2 + $0x10] sm:$0xff] %vm366, %v648
    %834 = vst.msk [vmem:[#allocation3] sm:$0xff] %vm366, 1e+30
    %vm835 = vcmask 125952
    %836 = vst.msk [vmem:[#allocation3 + $0x8] sm:$0xf] %vm835, 1e+30
    %837 = vst.msk [vmem:[#allocation4] sm:$0xff] %vm366, -1e+30
    %838 = vst.msk [vmem:[#allocation4 + $0x8] sm:$0xf] %vm835, -1e+30
    loop: start=0, step=1, limit=24
    $region74: #{tpu_custom_call.1} parent=1 // loop_pre_header
      _
    $region75: #{tpu_custom_call.1} parent=1 // loop_header
      %s840 = sphi 0, %s844
      %p841 = scmp.ge.s32.totalorder %s840, 24
    $region76: #{tpu_custom_call.1} parent=1 // loop_header_branch
      %843 = sbr.rel (%p841) target = $region80
    $region77: #{tpu_custom_call.1} parent=1 // loop_body
      %s845 = sld [smem:[#allocation5 + %s840]]
      %s846 = scalar_lea.vmem [#allocation2], %s840
      %v847 = vld [vmem:[%s846] sm:$0x1]
      %s848 = scalar_lea.vmem [#allocation3], %s845
      %v849 = vld [vmem:[%s848] sm:$0x1]
      %v850 = vmin.f32 %v849, %v847
      %vm851 = vcmask 122880
      %852 = vst.msk [vmem:[%s848] sm:$0x1] %vm851, %v850
      %s853 = scalar_lea.vmem [#allocation4], %s845
      %v854 = vld [vmem:[%s853] sm:$0x1]
      %v855 = vmax.f32 %v854, %v847
      %856 = vst.msk [vmem:[%s853] sm:$0x1] %vm851, %v855
    $region78: #{tpu_custom_call.1} parent=1 // loop_footer
      %s844 = sadd.s32 1, %s840
    $region79: #{tpu_custom_call.1} parent=1 // loop_footer_branch
      %839 = sbr.rel target = $region75
    $region80: #{tpu_custom_call.1} parent=1 // loop_exit
      _
    %vm857 = vcmp.gt.f32.partialorder %v777, 0.5
    %vm858 = vcmp.gt.f32.partialorder %v782, 0.5
    %v859 = vld [vmem:[#allocation3] sm:$0xff]
    %v860 = vld [vmem:[#allocation3 + $0x8] sm:$0xf]
    %v861 = vsel %vm857, 1, 0
    %v862 = vsel %vm858, 1, 0
    %863 = vset.pattern.permute.xlu0 32
    %864 = vperm.xlu0 %863, %v861
    %v865 = vpop.permute.xlu0 %864
    %866 = vset.pattern.permute.xlu0 32
    %867 = vperm.xlu0 %866, %v862
    %v868 = vpop.permute.xlu0 %867
    %vm869 = vcmp.eq.s32.totalorder %v865, 1
    %vm870 = vcmp.eq.s32.totalorder %v868, 1
    %v871 = vsel %vm869, %v859, 0.0
    %v872 = vsel %vm870, %v860, 0.0
    %v873 = vld [vmem:[#allocation4] sm:$0xff]
    %v874 = vld [vmem:[#allocation4 + $0x8] sm:$0xf]
    %v875 = vsel %vm869, %v873, 0.0
    %v876 = vsel %vm870, %v874, 0.0
    %v877 = vadd.f32 %v785, 1.0
    %v878 = vadd.f32 %v786, 1.0
    %v879 = vlog2.pop %v877
    %v880 = vmul.f32 %v879, 0.6931472
    %v881 = vlog2.pop %v878
    %v882 = vmul.f32 %v881, 0.6931472
    %v883 = vmul.f32 %v880, 0.85115373
    %v884 = vmul.f32 %v882, 0.85115373
    %v885 = vrcp.pop %v880
    %v886 = vmul.f32 1.1748759, %v885
    %v887 = vrcp.pop %v882
    %v888 = vmul.f32 1.1748759, %v887
    %890 = vset.pattern.permute.xlu0 32
    %891 = vperm.xlu0 %890, %v883
    %v892 = vpop.permute.xlu0 %891
    %895 = vset.pattern.permute.xlu0 32
    %896 = vperm.xlu0 %895, %v884
    %v897 = vpop.permute.xlu0 %896
    %v899 = vmul.f32 %v798, %v892
    %v900 = vmul.f32 %v800, %v897
    %v901 = vmul.f32 %v871, %v892
    %v902 = vmul.f32 %v872, %v897
    %v903 = vmul.f32 %v875, %v892
    %v904 = vmul.f32 %v876, %v897
    %v905 = vmul.f32 %v823, %v892
    %v906 = vmul.f32 %v830, %v897
    %908 = vset.pattern.permute.xlu0 32
    %909 = vperm.xlu0 %908, %v886
    %v910 = vpop.permute.xlu0 %909
    %913 = vset.pattern.permute.xlu0 32
    %914 = vperm.xlu0 %913, %v888
    %v915 = vpop.permute.xlu0 %914
    %v917 = vmul.f32 %v798, %v910
    %v918 = vmul.f32 %v800, %v915
    %v919 = vmul.f32 %v871, %v910
    %v920 = vmul.f32 %v872, %v915
    %v921 = vmul.f32 %v875, %v910
    %v922 = vmul.f32 %v876, %v915
    %v923 = vmul.f32 %v823, %v910
    %v924 = vmul.f32 %v830, %v915
    %927 = vrot.lane.b32.xlu0 %v798, 16
    %v928 = vpop.permute.xlu0 %927
    %929 = vrot.lane.b32.xlu0 %v800, 16
    %v930 = vpop.permute.xlu0 %929
    %935 = vrot.lane.b32.xlu0 %v871, 32
    %v936 = vpop.permute.xlu0 %935
    %937 = vrot.lane.b32.xlu0 %v872, 32
    %v938 = vpop.permute.xlu0 %937
    %943 = vrot.lane.b32.xlu0 %v875, 48
    %v944 = vpop.permute.xlu0 %943
    %945 = vrot.lane.b32.xlu0 %v876, 48
    %v946 = vpop.permute.xlu0 %945
    %951 = vrot.lane.b32.xlu0 %v823, 48
    %v952 = vpop.permute.xlu0 %951
    %953 = vrot.lane.b32.xlu0 %v830, 48
    %v954 = vpop.permute.xlu0 %953
    %959 = vrot.lane.b32.xlu0 %v899, 80
    %v960 = vpop.permute.xlu0 %959
    %961 = vrot.lane.b32.xlu0 %v900, 80
    %v962 = vpop.permute.xlu0 %961
    %967 = vrot.lane.b32.xlu0 %v901, 96
    %v968 = vpop.permute.xlu0 %967
    %969 = vrot.lane.b32.xlu0 %v902, 96
    %v970 = vpop.permute.xlu0 %969
    %975 = vrot.lane.b32.xlu0 %v903, 112
    %v976 = vpop.permute.xlu0 %975
    %977 = vrot.lane.b32.xlu0 %v904, 112
    %v978 = vpop.permute.xlu0 %977
    %983 = vrot.lane.b32.xlu0 %v905, 112
    %v984 = vpop.permute.xlu0 %983
    %985 = vrot.lane.b32.xlu0 %v906, 112
    %v986 = vpop.permute.xlu0 %985
    %991 = vrot.lane.b32.xlu0 %v917, 16
    %v992 = vpop.permute.xlu0 %991
    %993 = vrot.lane.b32.xlu0 %v918, 16
    %v994 = vpop.permute.xlu0 %993
    %999 = vrot.lane.b32.xlu0 %v919, 32
    %v1000 = vpop.permute.xlu0 %999
    %1001 = vrot.lane.b32.xlu0 %v920, 32
    %v1002 = vpop.permute.xlu0 %1001
    %1007 = vrot.lane.b32.xlu0 %v921, 48
    %v1008 = vpop.permute.xlu0 %1007
    %1009 = vrot.lane.b32.xlu0 %v922, 48
    %v1010 = vpop.permute.xlu0 %1009
    %1015 = vrot.lane.b32.xlu0 %v923, 48
    %v1016 = vpop.permute.xlu0 %1015
    %1017 = vrot.lane.b32.xlu0 %v924, 48
    %v1018 = vpop.permute.xlu0 %1017
    %v1021 = vsel %vm366, %v70, %v928
    %v1022 = vsel %vm366, %v71, %v930
    %v1023 = vsel %vm667, %v1021, %v936
    %v1024 = vsel %vm667, %v1022, %v938
    %vm1025 = vcmask 392192
    %v1026 = vsel %vm1025, %v1023, %v944
    %v1027 = vsel %vm1025, %v1024, %v946
    %vm1028 = vcmask 523264
    %v1029 = vsel %vm1028, %v1026, %v952
    %v1030 = vsel %vm1028, %v1027, %v954
    %vm1031 = vcmask 654336
    %v1032 = vsel %vm1031, %v1029, %v960
    %v1033 = vsel %vm1031, %v1030, %v962
    %vm1034 = vcmask 785408
    %v1035 = vsel %vm1034, %v1032, %v968
    %v1036 = vsel %vm1034, %v1033, %v970
    %vm1037 = vcmask 916480
    %v1038 = vsel %vm1037, %v1035, %v976
    %v1039 = vsel %vm1037, %v1036, %v978
    %v1040 = vsel %vm366, %v984, %v992
    %v1041 = vsel %vm366, %v986, %v994
    %v1042 = vsel %vm667, %v1040, %v1000
    %v1043 = vsel %vm667, %v1041, %v1002
    %v1044 = vsel %vm1025, %v1042, %v1008
    %v1045 = vsel %vm1025, %v1043, %v1010
    %v1046 = vsel %vm1028, %v1044, %v1016
    %v1047 = vsel %vm1028, %v1045, %v1018
    %v1048 = vld [vmem:[%s11] sm:$0xff]
    %v1049 = vld [vmem:[%s11 + $0x8] sm:$0xff]
    %v1050 = vld [vmem:[%s11 + $0x10] sm:$0xff]
    %v1051 = vld [vmem:[%s11 + $0x18] sm:$0xff]
    %v1052 = vld [vmem:[%s11 + $0x20] sm:$0xff]
    %v1053 = vld [vmem:[%s11 + $0x28] sm:$0xff]
    %v1054 = vld [vmem:[%s11 + $0x30] sm:$0xff]
    %v1055 = vld [vmem:[%s11 + $0x38] sm:$0xff]
    %v1056 = vld [vmem:[%s11 + $0x40] sm:$0xff]
    %v1057 = vld [vmem:[%s11 + $0x48] sm:$0xff]
    %v1058 = vld [vmem:[%s11 + $0x50] sm:$0xff]
    %v1059 = vld [vmem:[%s11 + $0x58] sm:$0xff]
    %v1060 = vld [vmem:[%s11 + $0x60] sm:$0xff]
    %v1061 = vld [vmem:[%s11 + $0x68] sm:$0xff]
    %v1062 = vld [vmem:[%s11 + $0x70] sm:$0xff]
    %v1063 = vld [vmem:[%s11 + $0x78] sm:$0xff]
    %v1064 = vld [vmem:[%s11 + $0x80] sm:$0xff]
    %v1065 = vld [vmem:[%s11 + $0x88] sm:$0xff]
    %v1066 = vld [vmem:[%s11 + $0x90] sm:$0xff]
    %v1067 = vld [vmem:[%s11 + $0x98] sm:$0xff]
    %v1068 = vld [vmem:[%s11 + $0xa0] sm:$0xff]
    %v1069 = vld [vmem:[%s11 + $0xa8] sm:$0xff]
    %v1070 = vld [vmem:[%s11 + $0xb0] sm:$0xff]
    %v1071 = vld [vmem:[%s11 + $0xb8] sm:$0xff]
    %v1072 = vld [vmem:[%s11 + $0xc0] sm:$0xff]
    %v1073 = vld [vmem:[%s11 + $0xc8] sm:$0xff]
    %v1074 = vld [vmem:[%s12] sm:$0x1]
    %v1076 = vlaneseq
    %v1077 = vshrl.u32 %v1076, 7
    %v1078 = vsub.s32 0, %v1077
    %v1079 = vrot.slane %v1074, %v1078
    %v1082 = vsel %vm1031, %v1046, 0
    %v1085 = vsel %vm1031, %v1047, 0
    %1087 = vmatprep.subr.mxu0 0.0
    %1088 = vmatpush1.msra.mxu0 %v1063
    %1089 = vmatprep.subr.mxu0 0.0
    %1090 = vmatpush1.msra.mxu0 %v1062
    %1091 = vmatprep.subr.mxu0 0.0
    %1092 = vmatpush1.msra.mxu0 %v1061
    %1093 = vmatprep.subr.mxu0 0.0
    %1094 = vmatpush1.msra.mxu0 %v1060
    %1095 = vmatprep.subr.mxu0 0.0
    %1096 = vmatpush1.msra.mxu0 %v1059
    %1097 = vmatprep.subr.mxu0 0.0
    %1098 = vmatpush1.msra.mxu0 %v1058
    %1099 = vmatprep.subr.mxu0 0.0
    %1100 = vmatpush1.msra.mxu0 %v1057
    %1101 = vmatprep.subr.mxu0 0.0
    %1102 = vmatpush1.msra.mxu0 %v1056
    %1103 = vmatprep.subr.mxu0 0.0
    %1104 = vmatpush1.msra.mxu0 %v1055
    %1105 = vmatprep.subr.mxu0 0.0
    %1106 = vmatpush1.msra.mxu0 %v1054
    %1107 = vmatprep.subr.mxu0 0.0
    %1108 = vmatpush1.msra.mxu0 %v1053
    %1109 = vmatprep.subr.mxu0 0.0
    %1110 = vmatpush1.msra.mxu0 %v1052
    %1111 = vmatprep.subr.mxu0 0.0
    %1112 = vmatpush1.msra.mxu0 %v1051
    %1113 = vmatprep.subr.mxu0 0.0
    %1114 = vmatpush1.msra.mxu0 %v1050
    %1115 = vmatprep.subr.mxu0 0.0
    %1116 = vmatpush1.msra.mxu0 %v1049
    %1117 = vmatprep.subr.mxu0 0.0
    %1118 = vmatpush1.msra.mxu0 %v1048
    %1119 = vmatprep.subr.mxu0 0.0
    %1120 = vmatpush2.msra.mxu0 0.0
    %1121 = vmatprep.subr.mxu0 0.0
    %1122 = vmatpush2.msra.mxu0 0.0
    %1123 = vmatprep.subr.mxu0 0.0
    %1124 = vmatpush2.msra.mxu0 0.0
    %1125 = vmatprep.subr.mxu0 0.0
    %1126 = vmatpush2.msra.mxu0 0.0
    %1127 = vmatprep.subr.mxu0 0.0
    %1128 = vmatpush2.msra.mxu0 0.0
    %1129 = vmatprep.subr.mxu0 0.0
    %1130 = vmatpush2.msra.mxu0 0.0
    %1131 = vmatprep.subr.mxu0 0.0
    %1132 = vmatpush2.msra.mxu0 %v1073
    %1133 = vmatprep.subr.mxu0 0.0
    %1134 = vmatpush2.msra.mxu0 %v1072
    %1135 = vmatprep.subr.mxu0 0.0
    %1136 = vmatpush2.msra.mxu0 %v1071
    %1137 = vmatprep.subr.mxu0 0.0
    %1138 = vmatpush2.msra.mxu0 %v1070
    %1139 = vmatprep.subr.mxu0 0.0
    %1140 = vmatpush2.msra.mxu0 %v1069
    %1141 = vmatprep.subr.mxu0 0.0
    %1142 = vmatpush2.msra.mxu0 %v1068
    %1143 = vmatprep.subr.mxu0 0.0
    %1144 = vmatpush2.msra.mxu0 %v1067
    %1145 = vmatprep.subr.mxu0 0.0
    %1146 = vmatpush2.msra.mxu0 %v1066
    %1147 = vmatprep.subr.mxu0 0.0
    %1148 = vmatpush2.msra.mxu0 %v1065
    %1149 = vmatprep.subr.mxu0 0.0
    %1150 = vmatpush2.msra.mxu0 %v1064
    %1151 = vmatprep.mubr.f32.mxu0 %v1082
    %1152 = vmatmul.mubr.f32.gmra.mxu0 %v1038
    %v1153 = vpop.f32.mrf.mxu0
    %v1154 = vadd.f32 %v1079, %v1153
    %v1155 = vpop.f32.mrf.mxu0
    %1156 = vmatprep.mubr.f32.mxu0 %v1085
    %1157 = vmatmul.mubr.f32.gmra.mxu0 %v1039
    %v1158 = vpop.f32.mrf.mxu0
    %v1159 = vadd.f32 %v1079, %v1158
    %v1160 = vpop.f32.mrf.mxu0
    %1161 = vdwg.mxu0
    %v1162 = vld [vmem:[%s13] sm:$0xff]
    %v1163 = vld [vmem:[%s13 + $0x8] sm:$0xff]
    %v1164 = vld [vmem:[%s13 + $0x10] sm:$0xff]
    %v1165 = vld [vmem:[%s13 + $0x18] sm:$0xff]
    %v1166 = vld [vmem:[%s14] sm:$0x1]
    %v1168 = vlaneseq
    %v1169 = vshrl.u32 %v1168, 7
    %v1170 = vsub.s32 0, %v1169
    %v1171 = vrot.slane %v1166, %v1170
    %v1174 = vsel %vm667, %v1154, 0
    %v1177 = vsel %vm667, %v1159, 0
    %1179 = vmatprep.subr.mxu0 0.0
    %1180 = vmatpush1.msra.mxu0 0.0
    %1181 = vmatprep.subr.mxu0 0.0
    %1182 = vmatpush1.msra.mxu0 0.0
    %1183 = vmatprep.subr.mxu0 0.0
    %1184 = vmatpush1.msra.mxu0 0.0
    %1185 = vmatprep.subr.mxu0 0.0
    %1186 = vmatpush1.msra.mxu0 0.0
    %1187 = vmatprep.subr.mxu0 0.0
    %1188 = vmatpush1.msra.mxu0 0.0
    %1189 = vmatprep.subr.mxu0 0.0
    %1190 = vmatpush1.msra.mxu0 0.0
    %1191 = vmatprep.subr.mxu0 0.0
    %1192 = vmatpush1.msra.mxu0 0.0
    %1193 = vmatprep.subr.mxu0 0.0
    %1194 = vmatpush1.msra.mxu0 0.0
    %1195 = vmatprep.subr.mxu0 0.0
    %1196 = vmatpush1.msra.mxu0 0.0
    %1197 = vmatprep.subr.mxu0 0.0
    %1198 = vmatpush1.msra.mxu0 0.0
    %1199 = vmatprep.subr.mxu0 0.0
    %1200 = vmatpush1.msra.mxu0 0.0
    %1201 = vmatprep.subr.mxu0 0.0
    %1202 = vmatpush1.msra.mxu0 0.0
    %1203 = vmatprep.subr.mxu0 0.0
    %1204 = vmatpush1.msra.mxu0 %v1165
    %1205 = vmatprep.subr.mxu0 0.0
    %1206 = vmatpush1.msra.mxu0 %v1164
    %1207 = vmatprep.subr.mxu0 0.0
    %1208 = vmatpush1.msra.mxu0 %v1163
    %1209 = vmatprep.subr.mxu0 0.0
    %1210 = vmatpush1.msra.mxu0 %v1162
    %1211 = vmatprep.subr.mxu0 0.0
    %1212 = vmatpush2.msra.mxu0 0.0
    %1213 = vmatprep.subr.mxu0 0.0
    %1214 = vmatpush2.msra.mxu0 0.0
    %1215 = vmatprep.subr.mxu0 0.0
    %1216 = vmatpush2.msra.mxu0 0.0
    %1217 = vmatprep.subr.mxu0 0.0
    %1218 = vmatpush2.msra.mxu0 0.0
    %1219 = vmatprep.subr.mxu0 0.0
    %1220 = vmatpush2.msra.mxu0 0.0
    %1221 = vmatprep.subr.mxu0 0.0
    %1222 = vmatpush2.msra.mxu0 0.0
    %1223 = vmatprep.subr.mxu0 0.0
    %1224 = vmatpush2.msra.mxu0 0.0
    %1225 = vmatprep.subr.mxu0 0.0
    %1226 = vmatpush2.msra.mxu0 0.0
    %1227 = vmatprep.subr.mxu0 0.0
    %1228 = vmatpush2.msra.mxu0 0.0
    %1229 = vmatprep.subr.mxu0 0.0
    %1230 = vmatpush2.msra.mxu0 0.0
    %1231 = vmatprep.subr.mxu0 0.0
    %1232 = vmatpush2.msra.mxu0 0.0
    %1233 = vmatprep.subr.mxu0 0.0
    %1234 = vmatpush2.msra.mxu0 0.0
    %1235 = vmatprep.subr.mxu0 0.0
    %1236 = vmatpush2.msra.mxu0 0.0
    %1237 = vmatprep.subr.mxu0 0.0
    %1238 = vmatpush2.msra.mxu0 0.0
    %1239 = vmatprep.subr.mxu0 0.0
    %1240 = vmatpush2.msra.mxu0 0.0
    %1241 = vmatprep.subr.mxu0 0.0
    %1242 = vmatpush2.msra.mxu0 0.0
    %1243 = vmatprep.mubr.f32.mxu0 0.0
    %1244 = vmatmul.mubr.f32.gmra.mxu0 %v1174
    %v1245 = vpop.f32.mrf.mxu0
    %v1246 = vadd.f32 %v1171, %v1245
    %v1247 = vpop.f32.mrf.mxu0
    %1248 = vmatprep.mubr.f32.mxu0 0.0
    %1249 = vmatmul.mubr.f32.gmra.mxu0 %v1177
    %v1250 = vpop.f32.mrf.mxu0
    %v1251 = vadd.f32 %v1171, %v1250
    %v1252 = vpop.f32.mrf.mxu0
    %1253 = vdwg.mxu0
    %v1254 = vsel %vm667, %v1246, 0.0
    %vm1255 = vcmask 257024
    %v1256 = vsel %vm1255, %v1251, 0.0
    %v1257 = vadd.f32 %v1254, %v1256
    %v1258 = vrot.slane %v1257, 4
    %v1259 = vadd.f32 %v1257, %v1258
    %v1260 = vrot.slane %v1259, 2
    %v1261 = vadd.f32 %v1259, %v1260
    %v1262 = vrot.slane %v1261, 1
    %v1263 = vadd.f32 %v1261, %v1262
    %v1264 = vrcp.pop 12.0
    %v1265 = vmul.f32 %v1263, %v1264
    %v1266 = vsub.f32 %v1246, %v1265
    %v1267 = vsub.f32 %v1251, %v1265
    %v1268 = vmul.f32 %v1266, %v1266
    %v1269 = vmul.f32 %v1267, %v1267
    %v1270 = vsel %vm667, %v1268, 0.0
    %v1271 = vsel %vm1255, %v1269, 0.0
    %v1272 = vadd.f32 %v1270, %v1271
    %v1273 = vrot.slane %v1272, 4
    %v1274 = vadd.f32 %v1272, %v1273
    %v1275 = vrot.slane %v1274, 2
    %v1276 = vadd.f32 %v1274, %v1275
    %v1277 = vrot.slane %v1276, 1
    %v1278 = vadd.f32 %v1276, %v1277
    %v1279 = vmul.f32 %v1278, %v1264
    %v1280 = vadd.f32 %v1279, 1e-05
    %v1281 = vrsqrt.pop %v1280
    %v1282 = vmul.f32 %v1266, %v1281
    %v1283 = vmul.f32 %v1267, %v1281
    %v1284 = vld [vmem:[%s15] sm:$0x1]
    %v1286 = vlaneseq
    %v1287 = vshrl.u32 %v1286, 7
    %v1288 = vsub.s32 0, %v1287
    %v1289 = vrot.slane %v1284, %v1288
    %v1291 = vmul.f32 %v1282, %v1289
    %v1292 = vmul.f32 %v1283, %v1289
    %v1293 = vld [vmem:[%s16] sm:$0x1]
    %v1295 = vlaneseq
    %v1296 = vshrl.u32 %v1295, 7
    %v1297 = vsub.s32 0, %v1296
    %v1298 = vrot.slane %v1293, %v1297
    %v1300 = vadd.f32 %v1291, %v1298
    %v1301 = vadd.f32 %v1292, %v1298
    %v1302 = vmax.f32 %v1300, 0.0
    %v1303 = vmax.f32 %v1301, 0.0
    %1304 = vst.msk [vmem:[#allocation8] sm:$0xff] %vm667, %v1302
    %1305 = vst.msk [vmem:[#allocation8 + $0x8] sm:$0xf] %vm1255, %v1303
    // Predicated region
    $region81: #{tpu_custom_call.1} parent=1 // pred_check
      _
    $region82: #{tpu_custom_call.1} parent=1 // pred_check_branch
      %1307 = sbr.rel (0) target = $region84
    $region83: #{tpu_custom_call.1} parent=1 // pred_region
      %s1309 = ssub.s32 256, 256
      %1310 = vsyncadd [#allocation6], %s1309
      %s1311 = sshll.u32 [#allocation8], 4
      %s1312 = int_to_ptr.vmem [resolvable:$true] %s1311
      %1317 = dma.vmem_to_hbm [thread:$0]  %s1312, 256, %s17, [#allocation6], 128, 128, 8
    $region84: #{tpu_custom_call.1} parent=1 // pred_fallthru
      _
    // Predicated region
    $region85: #{tpu_custom_call.1} parent=1 // pred_check
      _
    $region86: #{tpu_custom_call.1} parent=1 // pred_check_branch
      %1319 = sbr.rel (0) target = $region88
    $region87: #{tpu_custom_call.1} parent=1 // pred_region
      %1320 = dma.done [#allocation6], 256
    $region88: #{tpu_custom_call.1} parent=1 // pred_fallthru
      _
    %1321 = vsyncpa [#allocation6], 1
    %1322 = vsyncpa [#allocation7], 1

</llo_original>
